<compile_context>
chip_gen: v7x
topology: tpu7x:2x2x1
jax: 0.10.0
libtpu: 0.0.40
codegen_flags: <defaults>
</compile_context>

<pallas_src>
import jax
import jax.numpy as jnp
from jax.experimental import pallas as pl
from jax.experimental.pallas import tpu as pltpu

BN_EPS = 1e-5


def _make_msie_kernel(H, W, Cout):
    WCo = W * Cout

    def banded_conv(xpad, a_ref, K):
        """K row-matmuls against banded lane weights -> (H, W*Cout) f32."""
        acc = jnp.dot(xpad[0:H, :], a_ref[0],
                      preferred_element_type=jnp.float32)
        for kh in range(1, K):                       # static unroll: K MXU matmuls
            acc += jnp.dot(xpad[kh:kh + H, :], a_ref[kh],
                           preferred_element_type=jnp.float32)
        return acc

    def kernel(x_ref, a7_ref, a5_ref, a3_ref, a1_ref,
               b1_ref, b2_ref, b3_ref, bs_ref,
               o_ref, xp7, xp5, xp3):
        x = x_ref[0]                                 # (H, W*Cin)

        # ---- Conv7x7 + BN1 + ReLU ------------------------------------
        xp7[0:3, :] = jnp.zeros_like(xp7[0:3, :])    # vertical zero padding (top)
        xp7[3 + H:6 + H, :] = jnp.zeros_like(xp7[3 + H:6 + H, :])
        xp7[3:3 + H, :] = x
        h = jnp.maximum(banded_conv(xp7, a7_ref, 7) + b1_ref[...], 0.0)

        # ---- Conv5x5 + BN2 + ReLU ------------------------------------
        xp5[0:2, :] = jnp.zeros_like(xp5[0:2, :])
        xp5[2 + H:4 + H, :] = jnp.zeros_like(xp5[2 + H:4 + H, :])
        xp5[2:2 + H, :] = h
        h = jnp.maximum(banded_conv(xp5, a5_ref, 5) + b2_ref[...], 0.0)

        # ---- Conv3x3 + BN3 -------------------------------------------
        xp3[0:1, :] = jnp.zeros_like(xp3[0:1, :])
        xp3[1 + H:2 + H, :] = jnp.zeros_like(xp3[1 + H:2 + H, :])
        xp3[1:1 + H, :] = h
        x1 = banded_conv(xp3, a3_ref, 3) + b3_ref[...]

        # ---- Conv1x1 + Sigmoid gate (single matmul, sigmoid on EUP) ---
        x2 = jax.nn.sigmoid(
            jnp.dot(x, a1_ref[...], preferred_element_type=jnp.float32)
            + bs_ref[...])

        # ---- ReLU(x1 + x2): lane-dense (H, W*Cout) store --------------
        o_ref[0] = jnp.maximum(x1 + x2, 0.0).astype(o_ref.dtype)

    return kernel


def make_lane_weights(w, W):
    """Banded lane-space conv weights.

    w: (K, K, Cin, Cout) HWIO conv weights (BN scale already folded in).
    Returns A of shape (K, W*Cin, W*Cout) with
        A[kh, wi*Cin+ci, wo*Cout+co] = w[kh, kw, ci, co],  kw = wi - wo + p
    and zero elsewhere, so one matmul per kernel row realises every
    horizontal tap *and* the horizontal zero padding.
    """
    K, _, Cin, Cout = w.shape
    p = (K - 1) // 2
    wi = jnp.arange(W)[None, :, None]
    wo = jnp.arange(W)[None, None, :]
    kw = jnp.arange(K)[:, None, None]
    P = (wi == wo + kw - p).astype(w.dtype)            # (K, W, W)
    A = jnp.einsum("kio,hkcd->hicod", P, w)            # (K, W, Cin, W, Cout)
    return A.reshape(K, W * Cin, W * Cout)


def fold_bn(gamma, beta, mean, var, conv_bias):
    """Fold inference-mode BatchNorm (+ conv bias) into (scale, bias)."""
    scale = gamma / jnp.sqrt(var + BN_EPS)
    bias = beta + scale * (conv_bias - mean)
    return scale, bias


@jax.jit
def msie_forward(x_nchw, params):
    N, Cin, H, W = x_nchw.shape
    Cout = params["w1"].shape[-1]

    # NCHW -> lane-flattened NHWC: (N, H, W*Cin)
    x = jnp.transpose(x_nchw, (0, 2, 3, 1)).reshape(N, H, W * Cin)
    x = x.astype(jnp.float32)

    s1, c1 = fold_bn(*params["bn1"], params["b7"])
    s2, c2 = fold_bn(*params["bn2"], params["b5"])
    s3, c3 = fold_bn(*params["bn3"], params["b3"])

    # BN scale folded into weights; banded lane-space form (built once, trace time).
    a7 = make_lane_weights(params["w7"] * s1, W).astype(jnp.float32)  # (7, W*Cin,  W*Cout)
    a5 = make_lane_weights(params["w5"] * s2, W).astype(jnp.float32)  # (5, W*Cout, W*Cout)
    a3 = make_lane_weights(params["w3"] * s3, W).astype(jnp.float32)  # (3, W*Cout, W*Cout)
    a1 = make_lane_weights(params["w1"], W)[0].astype(jnp.float32)    # (W*Cin, W*Cout)

    # Per-channel biases tiled over W -> lane-broadcast add in the epilogue.
    def tile_bias(b):
        return jnp.tile(b, W).reshape(1, W * Cout).astype(jnp.float32)

    b1, b2, b3, bs = (tile_bias(c1), tile_bias(c2),
                      tile_bias(c3), tile_bias(params["b1"]))

    kernel = _make_msie_kernel(H, W, Cout)

    out = pl.pallas_call(
        kernel,
        out_shape=jax.ShapeDtypeStruct((N, H, W * Cout), jnp.float32),
        grid=(N,),
        in_specs=[
            pl.BlockSpec((1, H, W * Cin), lambda n: (n, 0, 0)),
            pl.BlockSpec(a7.shape, lambda n: (0, 0, 0)),
            pl.BlockSpec(a5.shape, lambda n: (0, 0, 0)),
            pl.BlockSpec(a3.shape, lambda n: (0, 0, 0)),
            pl.BlockSpec(a1.shape, lambda n: (0, 0)),
            pl.BlockSpec((1, W * Cout), lambda n: (0, 0)),
            pl.BlockSpec((1, W * Cout), lambda n: (0, 0)),
            pl.BlockSpec((1, W * Cout), lambda n: (0, 0)),
            pl.BlockSpec((1, W * Cout), lambda n: (0, 0)),
        ],
        out_specs=pl.BlockSpec((1, H, W * Cout), lambda n: (n, 0, 0)),
        scratch_shapes=[
            pltpu.VMEM((H + 6, W * Cin), jnp.float32),   # conv7 row-padded input
            pltpu.VMEM((H + 4, W * Cout), jnp.float32),  # conv5 row-padded input
            pltpu.VMEM((H + 2, W * Cout), jnp.float32),  # conv3 row-padded input
        ],
        compiler_params=pltpu.CompilerParams(
            dimension_semantics=("parallel",)),
    )(x, a7, a5, a3, a1, b1, b2, b3, bs)

    # (N, H, W*Cout) -> NCHW to match PyTorch output layout.
    return jnp.transpose(out.reshape(N, H, W, Cout), (0, 3, 1, 2))


def msie_reference(x_nchw, params):
    """Pure-JAX (XLA) reference of the PyTorch module, for validation."""
    x = jnp.transpose(x_nchw, (0, 2, 3, 1))   # NHWC

    def conv(h, w, b, K):
        p = (K - 1) // 2
        y = jax.lax.conv_general_dilated(
            h, w, window_strides=(1, 1), padding=[(p, p), (p, p)],
            dimension_numbers=("NHWC", "HWIO", "NHWC"))
        return y + b

    def bn(y, gamma, beta, mean, var):
        return gamma * (y - mean) / jnp.sqrt(var + BN_EPS) + beta

    h = jax.nn.relu(bn(conv(x, params["w7"], params["b7"], 7), *params["bn1"]))
    h = jax.nn.relu(bn(conv(h, params["w5"], params["b5"], 5), *params["bn2"]))
    x1 = bn(conv(h, params["w3"], params["b3"], 3), *params["bn3"])
    x2 = jax.nn.sigmoid(conv(x, params["w1"], params["b1"], 1))
    out = jax.nn.relu(x1 + x2)
    return jnp.transpose(out, (0, 3, 1, 2))


def init_params(key, in_ch, out_ch):
    """Deterministic synthetic parameters matching the PyTorch module shapes."""
    keys = jax.random.split(key, 16)
    ki = iter(keys)

    def conv(K, cin, cout):
        w = 0.1 * jax.random.normal(next(ki), (K, K, cin, cout), jnp.float32)
        b = 0.1 * jax.random.normal(next(ki), (cout,), jnp.float32)
        return w, b

    def bn(c):
        gamma = 1.0 + 0.1 * jax.random.normal(next(ki), (c,), jnp.float32)
        beta = 0.1 * jax.random.normal(next(ki), (c,), jnp.float32)
        mean = jnp.zeros((c,), jnp.float32)
        var = jnp.ones((c,), jnp.float32)
        return gamma, beta, mean, var

    p = {}
    p["w7"], p["b7"] = conv(7, in_ch, out_ch)
    p["bn1"] = bn(out_ch)
    p["w5"], p["b5"] = conv(5, out_ch, out_ch)
    p["bn2"] = bn(out_ch)
    p["w3"], p["b3"] = conv(3, out_ch, out_ch)
    p["bn3"] = bn(out_ch)
    p["w1"], p["b1"] = conv(1, in_ch, out_ch)
    return p


if __name__ == "__main__":
    key = jax.random.PRNGKey(0)
    k_x, k_p = jax.random.split(key)

    N, in_ch, out_ch, H, W = 2, 4, 8, 16, 16
    x = jax.random.normal(k_x, (N, in_ch, H, W), jnp.float32)   # NCHW like PyTorch
    params = init_params(k_p, in_ch, out_ch)

    y = msie_forward(x, params)
    y = jax.block_until_ready(y)

    assert y.shape == (N, out_ch, H, W), y.shape
    assert bool(jnp.all(jnp.isfinite(y)))
    assert bool(jnp.all(y >= 0.0))           # final ReLU

    y_ref = msie_reference(x, params)
    max_err = float(jnp.max(jnp.abs(y - y_ref)))
    assert bool(jnp.allclose(y, y_ref, atol=1e-3, rtol=1e-3)), max_err

    print("KERNEL_OK")
</pallas_src>

<mosaic_0001>
module attributes {stable_mosaic.version = 11 : i64} {
  func.func @kernel(%arg0: i32, %arg1: memref<1x16x64xf32, #tpu.memory_space<vmem>>, %arg2: memref<7x64x128xf32, #tpu.memory_space<vmem>>, %arg3: memref<5x128x128xf32, #tpu.memory_space<vmem>>, %arg4: memref<3x128x128xf32, #tpu.memory_space<vmem>>, %arg5: memref<64x128xf32, #tpu.memory_space<vmem>>, %arg6: memref<1x128xf32, #tpu.memory_space<vmem>>, %arg7: memref<1x128xf32, #tpu.memory_space<vmem>>, %arg8: memref<1x128xf32, #tpu.memory_space<vmem>>, %arg9: memref<1x128xf32, #tpu.memory_space<vmem>>, %arg10: memref<1x16x128xf32, #tpu.memory_space<vmem>>, %arg11: memref<22x64xf32, #tpu.memory_space<vmem>>, %arg12: memref<20x128xf32, #tpu.memory_space<vmem>>, %arg13: memref<18x128xf32, #tpu.memory_space<vmem>>) attributes {dimension_semantics = [#tpu.dimension_semantics<parallel>], iteration_bounds = array<i64: 2>, scalar_prefetch = 0 : i64, scratch_operands = 3 : i64, tpu.core_type = #tpu.core_type<tc>, window_params = [{transform_indices = @transform_0, window_bounds = array<i64: 1, 16, 64>}, {pipeline_mode = #tpu.pipeline_mode<synchronous>, transform_indices = @transform_1, window_bounds = array<i64: 7, 64, 128>}, {pipeline_mode = #tpu.pipeline_mode<synchronous>, transform_indices = @transform_2, window_bounds = array<i64: 5, 128, 128>}, {pipeline_mode = #tpu.pipeline_mode<synchronous>, transform_indices = @transform_3, window_bounds = array<i64: 3, 128, 128>}, {pipeline_mode = #tpu.pipeline_mode<synchronous>, transform_indices = @transform_4, window_bounds = array<i64: 64, 128>}, {pipeline_mode = #tpu.pipeline_mode<synchronous>, transform_indices = @transform_5, window_bounds = array<i64: 1, 128>}, {pipeline_mode = #tpu.pipeline_mode<synchronous>, transform_indices = @transform_6, window_bounds = array<i64: 1, 128>}, {pipeline_mode = #tpu.pipeline_mode<synchronous>, transform_indices = @transform_7, window_bounds = array<i64: 1, 128>}, {pipeline_mode = #tpu.pipeline_mode<synchronous>, transform_indices = @transform_8, window_bounds = array<i64: 1, 128>}, {transform_indices = @transform_9, window_bounds = array<i64: 1, 16, 128>}]} {
    %c0 = arith.constant 0 : index
    %c0_0 = arith.constant 0 : index
    %c0_1 = arith.constant 0 : index
    %0 = vector.load %arg1[%c0, %c0_0, %c0_1] : memref<1x16x64xf32, #tpu.memory_space<vmem>>, vector<1x16x64xf32>
    %1 = vector.shape_cast %0 : vector<1x16x64xf32> to vector<16x64xf32>
    %cst = arith.constant 0.000000e+00 : f32
    %2 = vector.broadcast %cst : f32 to vector<3x64xf32>
    %c0_2 = arith.constant 0 : index
    %c0_3 = arith.constant 0 : index
    %3 = vector.load %arg11[%c0_2, %c0_3] : memref<22x64xf32, #tpu.memory_space<vmem>>, vector<3x64xf32>
    tpu.vector_store %arg11[%c0_2, %c0_3], %2 {strides = array<i32>} : memref<22x64xf32, #tpu.memory_space<vmem>>, vector<3x64xf32>,
    %cst_4 = arith.constant 0.000000e+00 : f32
    %4 = vector.broadcast %cst_4 : f32 to vector<3x64xf32>
    %c19 = arith.constant 19 : index
    %c0_5 = arith.constant 0 : index
    %5 = vector.load %arg11[%c19, %c0_5] : memref<22x64xf32, #tpu.memory_space<vmem>>, vector<3x64xf32>
    tpu.vector_store %arg11[%c19, %c0_5], %4 {strides = array<i32>} : memref<22x64xf32, #tpu.memory_space<vmem>>, vector<3x64xf32>,
    %c3 = arith.constant 3 : index
    %c0_6 = arith.constant 0 : index
    %6 = vector.load %arg11[%c3, %c0_6] : memref<22x64xf32, #tpu.memory_space<vmem>>, vector<16x64xf32>
    tpu.vector_store %arg11[%c3, %c0_6], %1 {strides = array<i32>} : memref<22x64xf32, #tpu.memory_space<vmem>>, vector<16x64xf32>,
    %c0_7 = arith.constant 0 : index
    %c0_8 = arith.constant 0 : index
    %7 = vector.load %arg11[%c0_7, %c0_8] : memref<22x64xf32, #tpu.memory_space<vmem>>, vector<16x64xf32>
    %c0_9 = arith.constant 0 : index
    %c0_10 = arith.constant 0 : index
    %c0_11 = arith.constant 0 : index
    %8 = vector.load %arg2[%c0_9, %c0_10, %c0_11] : memref<7x64x128xf32, #tpu.memory_space<vmem>>, vector<1x64x128xf32>
    %9 = vector.shape_cast %8 : vector<1x64x128xf32> to vector<64x128xf32>
    %cst_12 = arith.constant dense<0.000000e+00> : vector<16x128xf32>
    %10 = tpu.matmul %7, %9, %cst_12 {dimension_numbers = #tpu.dot_dimension_numbers<[1], [0], [0], [1], [0, 0, 1, 1], [], []>} : vector<16x64xf32>, vector<64x128xf32>, vector<16x128xf32> -> vector<16x128xf32>
    %c1 = arith.constant 1 : index
    %c0_13 = arith.constant 0 : index
    %11 = vector.load %arg11[%c1, %c0_13] : memref<22x64xf32, #tpu.memory_space<vmem>>, vector<16x64xf32>
    %c1_14 = arith.constant 1 : index
    %c0_15 = arith.constant 0 : index
    %c0_16 = arith.constant 0 : index
    %12 = vector.load %arg2[%c1_14, %c0_15, %c0_16] : memref<7x64x128xf32, #tpu.memory_space<vmem>>, vector<1x64x128xf32>
    %13 = vector.shape_cast %12 : vector<1x64x128xf32> to vector<64x128xf32>
    %cst_17 = arith.constant dense<0.000000e+00> : vector<16x128xf32>
    %14 = tpu.matmul %11, %13, %cst_17 {dimension_numbers = #tpu.dot_dimension_numbers<[1], [0], [0], [1], [0, 0, 1, 1], [], []>} : vector<16x64xf32>, vector<64x128xf32>, vector<16x128xf32> -> vector<16x128xf32>
    %15 = arith.addf %10, %14 : vector<16x128xf32>
    %c2 = arith.constant 2 : index
    %c0_18 = arith.constant 0 : index
    %16 = vector.load %arg11[%c2, %c0_18] : memref<22x64xf32, #tpu.memory_space<vmem>>, vector<16x64xf32>
    %c2_19 = arith.constant 2 : index
    %c0_20 = arith.constant 0 : index
    %c0_21 = arith.constant 0 : index
    %17 = vector.load %arg2[%c2_19, %c0_20, %c0_21] : memref<7x64x128xf32, #tpu.memory_space<vmem>>, vector<1x64x128xf32>
    %18 = vector.shape_cast %17 : vector<1x64x128xf32> to vector<64x128xf32>
    %cst_22 = arith.constant dense<0.000000e+00> : vector<16x128xf32>
    %19 = tpu.matmul %16, %18, %cst_22 {dimension_numbers = #tpu.dot_dimension_numbers<[1], [0], [0], [1], [0, 0, 1, 1], [], []>} : vector<16x64xf32>, vector<64x128xf32>, vector<16x128xf32> -> vector<16x128xf32>
    %20 = arith.addf %15, %19 : vector<16x128xf32>
    %c3_23 = arith.constant 3 : index
    %c0_24 = arith.constant 0 : index
    %21 = vector.load %arg11[%c3_23, %c0_24] : memref<22x64xf32, #tpu.memory_space<vmem>>, vector<16x64xf32>
    %c3_25 = arith.constant 3 : index
    %c0_26 = arith.constant 0 : index
    %c0_27 = arith.constant 0 : index
    %22 = vector.load %arg2[%c3_25, %c0_26, %c0_27] : memref<7x64x128xf32, #tpu.memory_space<vmem>>, vector<1x64x128xf32>
    %23 = vector.shape_cast %22 : vector<1x64x128xf32> to vector<64x128xf32>
    %cst_28 = arith.constant dense<0.000000e+00> : vector<16x128xf32>
    %24 = tpu.matmul %21, %23, %cst_28 {dimension_numbers = #tpu.dot_dimension_numbers<[1], [0], [0], [1], [0, 0, 1, 1], [], []>} : vector<16x64xf32>, vector<64x128xf32>, vector<16x128xf32> -> vector<16x128xf32>
    %25 = arith.addf %20, %24 : vector<16x128xf32>
    %c4 = arith.constant 4 : index
    %c0_29 = arith.constant 0 : index
    %26 = vector.load %arg11[%c4, %c0_29] : memref<22x64xf32, #tpu.memory_space<vmem>>, vector<16x64xf32>
    %c4_30 = arith.constant 4 : index
    %c0_31 = arith.constant 0 : index
    %c0_32 = arith.constant 0 : index
    %27 = vector.load %arg2[%c4_30, %c0_31, %c0_32] : memref<7x64x128xf32, #tpu.memory_space<vmem>>, vector<1x64x128xf32>
    %28 = vector.shape_cast %27 : vector<1x64x128xf32> to vector<64x128xf32>
    %cst_33 = arith.constant dense<0.000000e+00> : vector<16x128xf32>
    %29 = tpu.matmul %26, %28, %cst_33 {dimension_numbers = #tpu.dot_dimension_numbers<[1], [0], [0], [1], [0, 0, 1, 1], [], []>} : vector<16x64xf32>, vector<64x128xf32>, vector<16x128xf32> -> vector<16x128xf32>
    %30 = arith.addf %25, %29 : vector<16x128xf32>
    %c5 = arith.constant 5 : index
    %c0_34 = arith.constant 0 : index
    %31 = vector.load %arg11[%c5, %c0_34] : memref<22x64xf32, #tpu.memory_space<vmem>>, vector<16x64xf32>
    %c5_35 = arith.constant 5 : index
    %c0_36 = arith.constant 0 : index
    %c0_37 = arith.constant 0 : index
    %32 = vector.load %arg2[%c5_35, %c0_36, %c0_37] : memref<7x64x128xf32, #tpu.memory_space<vmem>>, vector<1x64x128xf32>
    %33 = vector.shape_cast %32 : vector<1x64x128xf32> to vector<64x128xf32>
    %cst_38 = arith.constant dense<0.000000e+00> : vector<16x128xf32>
    %34 = tpu.matmul %31, %33, %cst_38 {dimension_numbers = #tpu.dot_dimension_numbers<[1], [0], [0], [1], [0, 0, 1, 1], [], []>} : vector<16x64xf32>, vector<64x128xf32>, vector<16x128xf32> -> vector<16x128xf32>
    %35 = arith.addf %30, %34 : vector<16x128xf32>
    %c6 = arith.constant 6 : index
    %c0_39 = arith.constant 0 : index
    %36 = vector.load %arg11[%c6, %c0_39] : memref<22x64xf32, #tpu.memory_space<vmem>>, vector<16x64xf32>
    %c6_40 = arith.constant 6 : index
    %c0_41 = arith.constant 0 : index
    %c0_42 = arith.constant 0 : index
    %37 = vector.load %arg2[%c6_40, %c0_41, %c0_42] : memref<7x64x128xf32, #tpu.memory_space<vmem>>, vector<1x64x128xf32>
    %38 = vector.shape_cast %37 : vector<1x64x128xf32> to vector<64x128xf32>
    %cst_43 = arith.constant dense<0.000000e+00> : vector<16x128xf32>
    %39 = tpu.matmul %36, %38, %cst_43 {dimension_numbers = #tpu.dot_dimension_numbers<[1], [0], [0], [1], [0, 0, 1, 1], [], []>} : vector<16x64xf32>, vector<64x128xf32>, vector<16x128xf32> -> vector<16x128xf32>
    %40 = arith.addf %35, %39 : vector<16x128xf32>
    %c0_44 = arith.constant 0 : index
    %c0_45 = arith.constant 0 : index
    %41 = vector.load %arg6[%c0_44, %c0_45] : memref<1x128xf32, #tpu.memory_space<vmem>>, vector<1x128xf32>
    %42 = vector.broadcast %41 : vector<1x128xf32> to vector<16x128xf32>
    %43 = arith.addf %40, %42 : vector<16x128xf32>
    %cst_46 = arith.constant 0.000000e+00 : f32
    %44 = vector.broadcast %cst_46 : f32 to vector<16x128xf32>
    %45 = arith.maximumf %43, %44 : vector<16x128xf32>
    %cst_47 = arith.constant 0.000000e+00 : f32
    %46 = vector.broadcast %cst_47 : f32 to vector<2x128xf32>
    %c0_48 = arith.constant 0 : index
    %c0_49 = arith.constant 0 : index
    %47 = vector.load %arg12[%c0_48, %c0_49] : memref<20x128xf32, #tpu.memory_space<vmem>>, vector<2x128xf32>
    tpu.vector_store %arg12[%c0_48, %c0_49], %46 {strides = array<i32>} : memref<20x128xf32, #tpu.memory_space<vmem>>, vector<2x128xf32>,
    %cst_50 = arith.constant 0.000000e+00 : f32
    %48 = vector.broadcast %cst_50 : f32 to vector<2x128xf32>
    %c18 = arith.constant 18 : index
    %c0_51 = arith.constant 0 : index
    %49 = vector.load %arg12[%c18, %c0_51] : memref<20x128xf32, #tpu.memory_space<vmem>>, vector<2x128xf32>
    tpu.vector_store %arg12[%c18, %c0_51], %48 {strides = array<i32>} : memref<20x128xf32, #tpu.memory_space<vmem>>, vector<2x128xf32>,
    %c2_52 = arith.constant 2 : index
    %c0_53 = arith.constant 0 : index
    %50 = vector.load %arg12[%c2_52, %c0_53] : memref<20x128xf32, #tpu.memory_space<vmem>>, vector<16x128xf32>
    tpu.vector_store %arg12[%c2_52, %c0_53], %45 {strides = array<i32>} : memref<20x128xf32, #tpu.memory_space<vmem>>, vector<16x128xf32>,
    %c0_54 = arith.constant 0 : index
    %c0_55 = arith.constant 0 : index
    %51 = vector.load %arg12[%c0_54, %c0_55] : memref<20x128xf32, #tpu.memory_space<vmem>>, vector<16x128xf32>
    %c0_56 = arith.constant 0 : index
    %c0_57 = arith.constant 0 : index
    %c0_58 = arith.constant 0 : index
    %52 = vector.load %arg3[%c0_56, %c0_57, %c0_58] : memref<5x128x128xf32, #tpu.memory_space<vmem>>, vector<1x128x128xf32>
    %53 = vector.shape_cast %52 : vector<1x128x128xf32> to vector<128x128xf32>
    %cst_59 = arith.constant dense<0.000000e+00> : vector<16x128xf32>
    %54 = tpu.matmul %51, %53, %cst_59 {dimension_numbers = #tpu.dot_dimension_numbers<[1], [0], [0], [1], [0, 0, 1, 1], [], []>} : vector<16x128xf32>, vector<128x128xf32>, vector<16x128xf32> -> vector<16x128xf32>
    %c1_60 = arith.constant 1 : index
    %c0_61 = arith.constant 0 : index
    %55 = vector.load %arg12[%c1_60, %c0_61] : memref<20x128xf32, #tpu.memory_space<vmem>>, vector<16x128xf32>
    %c1_62 = arith.constant 1 : index
    %c0_63 = arith.constant 0 : index
    %c0_64 = arith.constant 0 : index
    %56 = vector.load %arg3[%c1_62, %c0_63, %c0_64] : memref<5x128x128xf32, #tpu.memory_space<vmem>>, vector<1x128x128xf32>
    %57 = vector.shape_cast %56 : vector<1x128x128xf32> to vector<128x128xf32>
    %cst_65 = arith.constant dense<0.000000e+00> : vector<16x128xf32>
    %58 = tpu.matmul %55, %57, %cst_65 {dimension_numbers = #tpu.dot_dimension_numbers<[1], [0], [0], [1], [0, 0, 1, 1], [], []>} : vector<16x128xf32>, vector<128x128xf32>, vector<16x128xf32> -> vector<16x128xf32>
    %59 = arith.addf %54, %58 : vector<16x128xf32>
    %c2_66 = arith.constant 2 : index
    %c0_67 = arith.constant 0 : index
    %60 = vector.load %arg12[%c2_66, %c0_67] : memref<20x128xf32, #tpu.memory_space<vmem>>, vector<16x128xf32>
    %c2_68 = arith.constant 2 : index
    %c0_69 = arith.constant 0 : index
    %c0_70 = arith.constant 0 : index
    %61 = vector.load %arg3[%c2_68, %c0_69, %c0_70] : memref<5x128x128xf32, #tpu.memory_space<vmem>>, vector<1x128x128xf32>
    %62 = vector.shape_cast %61 : vector<1x128x128xf32> to vector<128x128xf32>
    %cst_71 = arith.constant dense<0.000000e+00> : vector<16x128xf32>
    %63 = tpu.matmul %60, %62, %cst_71 {dimension_numbers = #tpu.dot_dimension_numbers<[1], [0], [0], [1], [0, 0, 1, 1], [], []>} : vector<16x128xf32>, vector<128x128xf32>, vector<16x128xf32> -> vector<16x128xf32>
    %64 = arith.addf %59, %63 : vector<16x128xf32>
    %c3_72 = arith.constant 3 : index
    %c0_73 = arith.constant 0 : index
    %65 = vector.load %arg12[%c3_72, %c0_73] : memref<20x128xf32, #tpu.memory_space<vmem>>, vector<16x128xf32>
    %c3_74 = arith.constant 3 : index
    %c0_75 = arith.constant 0 : index
    %c0_76 = arith.constant 0 : index
    %66 = vector.load %arg3[%c3_74, %c0_75, %c0_76] : memref<5x128x128xf32, #tpu.memory_space<vmem>>, vector<1x128x128xf32>
    %67 = vector.shape_cast %66 : vector<1x128x128xf32> to vector<128x128xf32>
    %cst_77 = arith.constant dense<0.000000e+00> : vector<16x128xf32>
    %68 = tpu.matmul %65, %67, %cst_77 {dimension_numbers = #tpu.dot_dimension_numbers<[1], [0], [0], [1], [0, 0, 1, 1], [], []>} : vector<16x128xf32>, vector<128x128xf32>, vector<16x128xf32> -> vector<16x128xf32>
    %69 = arith.addf %64, %68 : vector<16x128xf32>
    %c4_78 = arith.constant 4 : index
    %c0_79 = arith.constant 0 : index
    %70 = vector.load %arg12[%c4_78, %c0_79] : memref<20x128xf32, #tpu.memory_space<vmem>>, vector<16x128xf32>
    %c4_80 = arith.constant 4 : index
    %c0_81 = arith.constant 0 : index
    %c0_82 = arith.constant 0 : index
    %71 = vector.load %arg3[%c4_80, %c0_81, %c0_82] : memref<5x128x128xf32, #tpu.memory_space<vmem>>, vector<1x128x128xf32>
    %72 = vector.shape_cast %71 : vector<1x128x128xf32> to vector<128x128xf32>
    %cst_83 = arith.constant dense<0.000000e+00> : vector<16x128xf32>
    %73 = tpu.matmul %70, %72, %cst_83 {dimension_numbers = #tpu.dot_dimension_numbers<[1], [0], [0], [1], [0, 0, 1, 1], [], []>} : vector<16x128xf32>, vector<128x128xf32>, vector<16x128xf32> -> vector<16x128xf32>
    %74 = arith.addf %69, %73 : vector<16x128xf32>
    %c0_84 = arith.constant 0 : index
    %c0_85 = arith.constant 0 : index
    %75 = vector.load %arg7[%c0_84, %c0_85] : memref<1x128xf32, #tpu.memory_space<vmem>>, vector<1x128xf32>
    %76 = vector.broadcast %75 : vector<1x128xf32> to vector<16x128xf32>
    %77 = arith.addf %74, %76 : vector<16x128xf32>
    %cst_86 = arith.constant 0.000000e+00 : f32
    %78 = vector.broadcast %cst_86 : f32 to vector<16x128xf32>
    %79 = arith.maximumf %77, %78 : vector<16x128xf32>
    %cst_87 = arith.constant 0.000000e+00 : f32
    %80 = vector.broadcast %cst_87 : f32 to vector<1x128xf32>
    %c0_88 = arith.constant 0 : index
    %c0_89 = arith.constant 0 : index
    %81 = vector.load %arg13[%c0_88, %c0_89] : memref<18x128xf32, #tpu.memory_space<vmem>>, vector<1x128xf32>
    tpu.vector_store %arg13[%c0_88, %c0_89], %80 {strides = array<i32>} : memref<18x128xf32, #tpu.memory_space<vmem>>, vector<1x128xf32>,
    %cst_90 = arith.constant 0.000000e+00 : f32
    %82 = vector.broadcast %cst_90 : f32 to vector<1x128xf32>
    %c17 = arith.constant 17 : index
    %c0_91 = arith.constant 0 : index
    %83 = vector.load %arg13[%c17, %c0_91] : memref<18x128xf32, #tpu.memory_space<vmem>>, vector<1x128xf32>
    tpu.vector_store %arg13[%c17, %c0_91], %82 {strides = array<i32>} : memref<18x128xf32, #tpu.memory_space<vmem>>, vector<1x128xf32>,
    %c1_92 = arith.constant 1 : index
    %c0_93 = arith.constant 0 : index
    %84 = vector.load %arg13[%c1_92, %c0_93] : memref<18x128xf32, #tpu.memory_space<vmem>>, vector<16x128xf32>
    tpu.vector_store %arg13[%c1_92, %c0_93], %79 {strides = array<i32>} : memref<18x128xf32, #tpu.memory_space<vmem>>, vector<16x128xf32>,
    %c0_94 = arith.constant 0 : index
    %c0_95 = arith.constant 0 : index
    %85 = vector.load %arg13[%c0_94, %c0_95] : memref<18x128xf32, #tpu.memory_space<vmem>>, vector<16x128xf32>
    %c0_96 = arith.constant 0 : index
    %c0_97 = arith.constant 0 : index
    %c0_98 = arith.constant 0 : index
    %86 = vector.load %arg4[%c0_96, %c0_97, %c0_98] : memref<3x128x128xf32, #tpu.memory_space<vmem>>, vector<1x128x128xf32>
    %87 = vector.shape_cast %86 : vector<1x128x128xf32> to vector<128x128xf32>
    %cst_99 = arith.constant dense<0.000000e+00> : vector<16x128xf32>
    %88 = tpu.matmul %85, %87, %cst_99 {dimension_numbers = #tpu.dot_dimension_numbers<[1], [0], [0], [1], [0, 0, 1, 1], [], []>} : vector<16x128xf32>, vector<128x128xf32>, vector<16x128xf32> -> vector<16x128xf32>
    %c1_100 = arith.constant 1 : index
    %c0_101 = arith.constant 0 : index
    %89 = vector.load %arg13[%c1_100, %c0_101] : memref<18x128xf32, #tpu.memory_space<vmem>>, vector<16x128xf32>
    %c1_102 = arith.constant 1 : index
    %c0_103 = arith.constant 0 : index
    %c0_104 = arith.constant 0 : index
    %90 = vector.load %arg4[%c1_102, %c0_103, %c0_104] : memref<3x128x128xf32, #tpu.memory_space<vmem>>, vector<1x128x128xf32>
    %91 = vector.shape_cast %90 : vector<1x128x128xf32> to vector<128x128xf32>
    %cst_105 = arith.constant dense<0.000000e+00> : vector<16x128xf32>
    %92 = tpu.matmul %89, %91, %cst_105 {dimension_numbers = #tpu.dot_dimension_numbers<[1], [0], [0], [1], [0, 0, 1, 1], [], []>} : vector<16x128xf32>, vector<128x128xf32>, vector<16x128xf32> -> vector<16x128xf32>
    %93 = arith.addf %88, %92 : vector<16x128xf32>
    %c2_106 = arith.constant 2 : index
    %c0_107 = arith.constant 0 : index
    %94 = vector.load %arg13[%c2_106, %c0_107] : memref<18x128xf32, #tpu.memory_space<vmem>>, vector<16x128xf32>
    %c2_108 = arith.constant 2 : index
    %c0_109 = arith.constant 0 : index
    %c0_110 = arith.constant 0 : index
    %95 = vector.load %arg4[%c2_108, %c0_109, %c0_110] : memref<3x128x128xf32, #tpu.memory_space<vmem>>, vector<1x128x128xf32>
    %96 = vector.shape_cast %95 : vector<1x128x128xf32> to vector<128x128xf32>
    %cst_111 = arith.constant dense<0.000000e+00> : vector<16x128xf32>
    %97 = tpu.matmul %94, %96, %cst_111 {dimension_numbers = #tpu.dot_dimension_numbers<[1], [0], [0], [1], [0, 0, 1, 1], [], []>} : vector<16x128xf32>, vector<128x128xf32>, vector<16x128xf32> -> vector<16x128xf32>
    %98 = arith.addf %93, %97 : vector<16x128xf32>
    %c0_112 = arith.constant 0 : index
    %c0_113 = arith.constant 0 : index
    %99 = vector.load %arg8[%c0_112, %c0_113] : memref<1x128xf32, #tpu.memory_space<vmem>>, vector<1x128xf32>
    %100 = vector.broadcast %99 : vector<1x128xf32> to vector<16x128xf32>
    %101 = arith.addf %98, %100 : vector<16x128xf32>
    %c0_114 = arith.constant 0 : index
    %c0_115 = arith.constant 0 : index
    %102 = vector.load %arg5[%c0_114, %c0_115] : memref<64x128xf32, #tpu.memory_space<vmem>>, vector<64x128xf32>
    %cst_116 = arith.constant dense<0.000000e+00> : vector<16x128xf32>
    %103 = tpu.matmul %1, %102, %cst_116 {dimension_numbers = #tpu.dot_dimension_numbers<[1], [0], [0], [1], [0, 0, 1, 1], [], []>} : vector<16x64xf32>, vector<64x128xf32>, vector<16x128xf32> -> vector<16x128xf32>
    %c0_117 = arith.constant 0 : index
    %c0_118 = arith.constant 0 : index
    %104 = vector.load %arg9[%c0_117, %c0_118] : memref<1x128xf32, #tpu.memory_space<vmem>>, vector<1x128xf32>
    %105 = vector.broadcast %104 : vector<1x128xf32> to vector<16x128xf32>
    %106 = arith.addf %103, %105 : vector<16x128xf32>
    %107 = arith.negf %106 : vector<16x128xf32>
    %108 = math.exp %107 : vector<16x128xf32>
    %cst_119 = arith.constant 1.000000e+00 : f32
    %109 = vector.broadcast %cst_119 : f32 to vector<16x128xf32>
    %110 = arith.addf %109, %108 : vector<16x128xf32>
    %111 = arith.divf %109, %110 : vector<16x128xf32>
    %112 = arith.addf %101, %111 : vector<16x128xf32>
    %cst_120 = arith.constant 0.000000e+00 : f32
    %113 = vector.broadcast %cst_120 : f32 to vector<16x128xf32>
    %114 = arith.maximumf %112, %113 : vector<16x128xf32>
    %c0_121 = arith.constant 0 : index
    %c0_122 = arith.constant 0 : index
    %c0_123 = arith.constant 0 : index
    %115 = vector.load %arg10[%c0_121, %c0_122, %c0_123] : memref<1x16x128xf32, #tpu.memory_space<vmem>>, vector<1x16x128xf32>
    %116 = vector.shape_cast %115 : vector<1x16x128xf32> to vector<16x128xf32>
    %117 = vector.shape_cast %114 : vector<16x128xf32> to vector<1x16x128xf32>
    tpu.vector_store %arg10[%c0_121, %c0_122, %c0_123], %117 {strides = array<i32>} : memref<1x16x128xf32, #tpu.memory_space<vmem>>, vector<1x16x128xf32>,
    return
  }
  func.func @transform_0(%arg0: i32) -> (i32, i32, i32) {
    %c0_i32 = arith.constant 0 : i32
    %c0_i32_0 = arith.constant 0 : i32
    %c0_i32_1 = arith.constant 0 : i32
    return %arg0, %c0_i32, %c0_i32_0 : i32, i32, i32
  }
  func.func @transform_1(%arg0: i32) -> (i32, i32, i32) {
    %c0_i32 = arith.constant 0 : i32
    %c0_i32_0 = arith.constant 0 : i32
    %c0_i32_1 = arith.constant 0 : i32
    %c0_i32_2 = arith.constant 0 : i32
    return %c0_i32, %c0_i32_0, %c0_i32_1 : i32, i32, i32
  }
  func.func @transform_2(%arg0: i32) -> (i32, i32, i32) {
    %c0_i32 = arith.constant 0 : i32
    %c0_i32_0 = arith.constant 0 : i32
    %c0_i32_1 = arith.constant 0 : i32
    %c0_i32_2 = arith.constant 0 : i32
    return %c0_i32, %c0_i32_0, %c0_i32_1 : i32, i32, i32
  }
  func.func @transform_3(%arg0: i32) -> (i32, i32, i32) {
    %c0_i32 = arith.constant 0 : i32
    %c0_i32_0 = arith.constant 0 : i32
    %c0_i32_1 = arith.constant 0 : i32
    %c0_i32_2 = arith.constant 0 : i32
    return %c0_i32, %c0_i32_0, %c0_i32_1 : i32, i32, i32
  }
  func.func @transform_4(%arg0: i32) -> (i32, i32) {
    %c0_i32 = arith.constant 0 : i32
    %c0_i32_0 = arith.constant 0 : i32
    %c0_i32_1 = arith.constant 0 : i32
    return %c0_i32, %c0_i32_0 : i32, i32
  }
  func.func @transform_5(%arg0: i32) -> (i32, i32) {
    %c0_i32 = arith.constant 0 : i32
    %c0_i32_0 = arith.constant 0 : i32
    %c0_i32_1 = arith.constant 0 : i32
    return %c0_i32, %c0_i32_0 : i32, i32
  }
  func.func @transform_6(%arg0: i32) -> (i32, i32) {
    %c0_i32 = arith.constant 0 : i32
    %c0_i32_0 = arith.constant 0 : i32
    %c0_i32_1 = arith.constant 0 : i32
    return %c0_i32, %c0_i32_0 : i32, i32
  }
  func.func @transform_7(%arg0: i32) -> (i32, i32) {
    %c0_i32 = arith.constant 0 : i32
    %c0_i32_0 = arith.constant 0 : i32
    %c0_i32_1 = arith.constant 0 : i32
    return %c0_i32, %c0_i32_0 : i32, i32
  }
  func.func @transform_8(%arg0: i32) -> (i32, i32) {
    %c0_i32 = arith.constant 0 : i32
    %c0_i32_0 = arith.constant 0 : i32
    %c0_i32_1 = arith.constant 0 : i32
    return %c0_i32, %c0_i32_0 : i32, i32
  }
  func.func @transform_9(%arg0: i32) -> (i32, i32, i32) {
    %c0_i32 = arith.constant 0 : i32
    %c0_i32_0 = arith.constant 0 : i32
    %c0_i32_1 = arith.constant 0 : i32
    return %arg0, %c0_i32, %c0_i32_0 : i32, i32, i32
  }
}

</mosaic_0001>

<llo_original>
// kernel: tile.23
$region0: #{tile.23}
  #allocation0 [shape = 's32[1]{0}', space=sflag, size = 0x4, scoped, tag = 'scoped memory for tile.23']
  %s0 = inlined_call_operand.vmem [shape: f32[8], index: 0, kind: input, shape index: {}]
  %s1 = inlined_call_operand.vmem [shape: f32[16,8], index: 1, kind: output, shape index: {}]
  // Predicated region
  $region2: #{tile.23} parent=0 // pred_check
    _
  $region3: #{tile.23} parent=0 // pred_check_branch
    %3 = sbr.rel (0) target = $region5
  $region4: #{tile.23} parent=0 // pred_region
    _
  $region5: #{tile.23} parent=0 // pred_fallthru
    _
  %v4 = vld [vmem:[%s0] ss:$0 sm:$0xff]
  %5 = vst [vmem:[%s1] sm:$0xff] %v4
  %s6 = scalar_lea.vmem %s1, 8
  %7 = vst [vmem:[%s6] sm:$0xff] %v4

// kernel: tile.24
$region0: #{tile.24}
  %s0 = inlined_call_operand.vmem [shape: f32[16,8], index: 0, kind: input, shape index: {}]
  %s1 = inlined_call_operand.vmem [shape: f32[1,128], index: 1, kind: output, shape index: {}]
  $region1: #{tile.24} parent=0
    #allocation0 [shape = 'u8[4096]{0}', space=vmem, size = 0x1000, scoped, tag = 'scoped mem for output reshape']
    %v2 = vld [vmem:[%s0] sm:$0x1]
    %vm3 = vcmask 64512
    %4 = vst.msk [vmem:[#allocation0] sm:$0x1] %vm3, %v2
    %s5 = scalar_lea.vmem %s0, 15
    %v6 = vld [vmem:[%s5] sm:$0x1]
    %7 = vrot.lane.b32.xlu0 %v6, 120
    %v8 = vpop.permute.xlu0 %7
    %vm9 = vcmask 1048512
    %10 = vst.msk [vmem:[#allocation0] sm:$0x1] %vm9, %v8
    %s11 = scalar_lea.vmem %s0, 14
    %v12 = vld [vmem:[%s11] sm:$0x1]
    %13 = vrot.lane.b32.xlu0 %v12, 112
    %v14 = vpop.permute.xlu0 %13
    %vm15 = vcmask 982912
    %16 = vst.msk [vmem:[#allocation0] sm:$0x1] %vm15, %v14
    %s17 = scalar_lea.vmem %s0, 13
    %v18 = vld [vmem:[%s17] sm:$0x1]
    %19 = vrot.lane.b32.xlu0 %v18, 104
    %v20 = vpop.permute.xlu0 %19
    %vm21 = vcmask 917312
    %22 = vst.msk [vmem:[#allocation0] sm:$0x1] %vm21, %v20
    %s23 = scalar_lea.vmem %s0, 12
    %v24 = vld [vmem:[%s23] sm:$0x1]
    %25 = vrot.lane.b32.xlu0 %v24, 96
    %v26 = vpop.permute.xlu0 %25
    %vm27 = vcmask 851712
    %28 = vst.msk [vmem:[#allocation0] sm:$0x1] %vm27, %v26
    %s29 = scalar_lea.vmem %s0, 11
    %v30 = vld [vmem:[%s29] sm:$0x1]
    %31 = vrot.lane.b32.xlu0 %v30, 88
    %v32 = vpop.permute.xlu0 %31
    %vm33 = vcmask 786112
    %34 = vst.msk [vmem:[#allocation0] sm:$0x1] %vm33, %v32
    %s35 = scalar_lea.vmem %s0, 10
    %v36 = vld [vmem:[%s35] sm:$0x1]
    %37 = vrot.lane.b32.xlu0 %v36, 80
    %v38 = vpop.permute.xlu0 %37
    %vm39 = vcmask 720512
    %40 = vst.msk [vmem:[#allocation0] sm:$0x1] %vm39, %v38
    %s41 = scalar_lea.vmem %s0, 9
    %v42 = vld [vmem:[%s41] sm:$0x1]
    %43 = vrot.lane.b32.xlu0 %v42, 72
    %v44 = vpop.permute.xlu0 %43
    %vm45 = vcmask 654912
    %46 = vst.msk [vmem:[#allocation0] sm:$0x1] %vm45, %v44
    %s47 = scalar_lea.vmem %s0, 8
    %v48 = vld [vmem:[%s47] sm:$0x1]
    %49 = vrot.lane.b32.xlu0 %v48, 64
    %v50 = vpop.permute.xlu0 %49
    %vm51 = vcmask 589312
    %52 = vst.msk [vmem:[#allocation0] sm:$0x1] %vm51, %v50
    %s53 = scalar_lea.vmem %s0, 7
    %v54 = vld [vmem:[%s53] sm:$0x1]
    %55 = vrot.lane.b32.xlu0 %v54, 56
    %v56 = vpop.permute.xlu0 %55
    %vm57 = vcmask 523712
    %58 = vst.msk [vmem:[#allocation0] sm:$0x1] %vm57, %v56
    %s59 = scalar_lea.vmem %s0, 6
    %v60 = vld [vmem:[%s59] sm:$0x1]
    %61 = vrot.lane.b32.xlu0 %v60, 48
    %v62 = vpop.permute.xlu0 %61
    %vm63 = vcmask 458112
    %64 = vst.msk [vmem:[#allocation0] sm:$0x1] %vm63, %v62
    %s65 = scalar_lea.vmem %s0, 5
    %v66 = vld [vmem:[%s65] sm:$0x1]
    %67 = vrot.lane.b32.xlu0 %v66, 40
    %v68 = vpop.permute.xlu0 %67
    %vm69 = vcmask 392512
    %70 = vst.msk [vmem:[#allocation0] sm:$0x1] %vm69, %v68
    %s71 = scalar_lea.vmem %s0, 4
    %v72 = vld [vmem:[%s71] sm:$0x1]
    %73 = vrot.lane.b32.xlu0 %v72, 32
    %v74 = vpop.permute.xlu0 %73
    %vm75 = vcmask 326912
    %76 = vst.msk [vmem:[#allocation0] sm:$0x1] %vm75, %v74
    %s77 = scalar_lea.vmem %s0, 3
    %v78 = vld [vmem:[%s77] sm:$0x1]
    %79 = vrot.lane.b32.xlu0 %v78, 24
    %v80 = vpop.permute.xlu0 %79
    %vm81 = vcmask 261312
    %82 = vst.msk [vmem:[#allocation0] sm:$0x1] %vm81, %v80
    %s83 = scalar_lea.vmem %s0, 2
    %v84 = vld [vmem:[%s83] sm:$0x1]
    %85 = vrot.lane.b32.xlu0 %v84, 16
    %v86 = vpop.permute.xlu0 %85
    %vm87 = vcmask 195712
    %88 = vst.msk [vmem:[#allocation0] sm:$0x1] %vm87, %v86
    %s89 = scalar_lea.vmem %s0, 1
    %v90 = vld [vmem:[%s89] sm:$0x1]
    %91 = vrot.lane.b32.xlu0 %v90, 8
    %v92 = vpop.permute.xlu0 %91
    %vm93 = vcmask 130112
    %94 = vst.msk [vmem:[#allocation0] sm:$0x1] %vm93, %v92
    %s96 = sshllo.u32 0, 1
    %v98 = vld [vmem:[#allocation0] sm:%s96]
    %s99 = sshllo.u32 0, 1
    %100 = vst [vmem:[%s1] sm:%s99] %v98

// kernel: msie_forward.1
$region0: #{msie_forward.1}
  #allocation0 [shape = 'u32[]', space=smem, size = 0x4, offset = 0x4, fixed_abs, tag = 'smem constant byte address 0x4 - core index']
  #allocation1 [shape = 'u32[144,128]{1,0:T(1,128)}', space=vmem, size = 0x12000, scoped, tag = 'internal scratch']
  #allocation2 [shape = 'f32[22,64]{1,0:T(8,128)}', space=vmem, size = 0x3000, scoped, tag = 'scratch operand']
  #allocation3 [shape = 'f32[20,128]{1,0:T(8,128)}', space=vmem, size = 0x3000, scoped, tag = 'scratch operand']
  #allocation4 [shape = 'f32[18,128]{1,0:T(8,128)}', space=vmem, size = 0x3000, scoped, tag = 'scratch operand']
  %s0 = inlined_call_operand.vmem [shape: f32[2,16,64], index: 0, kind: input, shape index: {}]
  %s1 = inlined_call_operand.vmem [shape: f32[7,64,128], index: 1, kind: input, shape index: {}]
  %s2 = inlined_call_operand.vmem [shape: f32[5,128,128], index: 2, kind: input, shape index: {}]
  %s3 = inlined_call_operand.vmem [shape: f32[3,128,128], index: 3, kind: input, shape index: {}]
  %s4 = inlined_call_operand.vmem [shape: f32[64,128], index: 4, kind: input, shape index: {}]
  %s5 = inlined_call_operand.vmem [shape: f32[1,128], index: 5, kind: input, shape index: {}]
  %s6 = inlined_call_operand.vmem [shape: f32[1,128], index: 6, kind: input, shape index: {}]
  %s7 = inlined_call_operand.vmem [shape: f32[1,128], index: 7, kind: input, shape index: {}]
  %s8 = inlined_call_operand.vmem [shape: f32[1,128], index: 8, kind: input, shape index: {}]
  %s9 = inlined_call_operand.vmem [shape: f32[2,16,128], index: 9, kind: output, shape index: {}]
  %s10 = sld [smem:[#allocation0]]
  $region69: #{msie_forward.1} parent=0
    _
  %s12 = ssub.s32 1, %s10
  %s13 = scalar_select 0, %s12, %s10
  loop: start=0, step=1, limit=4
  $region2: #{msie_forward.1} parent=0 // loop_pre_header
    _
  $region3: #{msie_forward.1} parent=0 // loop_header
    %s15 = sphi 0, %s19
    %p16 = scmp.ge.s32.totalorder %s15, 4
    %s25 = sphi 0, %s27
    %s28 = sphi 0, %s25
    %s29 = sphi 0, %s28
    %s45 = sphi 0, %s29
    %s49 = sphi 0, %s49
    %s51 = sphi 0, %s49
    %s52 = sphi 0, %s51
    %s66 = sphi 0, %s52
    %s70 = sphi 0, %s70
    %s72 = sphi 0, %s70
    %s73 = sphi 0, %s72
    %s87 = sphi 0, %s73
    %s91 = sphi 0, %s91
    %s93 = sphi 0, %s91
    %s94 = sphi 0, %s93
    %s108 = sphi 0, %s94
    %s112 = sphi 0, %s112
    %s114 = sphi 0, %s112
    %s115 = sphi 0, %s114
    %s129 = sphi 0, %s115
    %s133 = sphi 0, %s133
    %s135 = sphi 0, %s133
    %s136 = sphi 0, %s135
    %s150 = sphi 0, %s136
    %s154 = sphi 0, %s154
    %s156 = sphi 0, %s154
    %s157 = sphi 0, %s156
    %s171 = sphi 0, %s157
    %s175 = sphi 0, %s175
    %s177 = sphi 0, %s175
    %s178 = sphi 0, %s177
    %s192 = sphi 0, %s178
    %s196 = sphi 0, %s196
    %s198 = sphi 0, %s196
    %s199 = sphi 0, %s198
    %s213 = sphi 0, %s199
    %s219 = sphi 0, %s221
    %s222 = sphi 0, %s219
    %s223 = sphi 0, %s222
    %s239 = sphi 0, %s223
  $region4: #{msie_forward.1} parent=0 // loop_header_branch
    %18 = sbr.rel (%p16) target = $region8
  $region5: #{msie_forward.1} parent=0 // loop_body
    %s20 = ssub.s32 %s15, 1
    %s21 = ssub.s32 %s15, 2
    %s22 = sadd.s32 %s15, 1
    %s23 = ssub.s32 %s15, %s22
    %p24 = scmp.eq.s32.totalorder %s23, 0
    %s26 = sadd.s32 %s25, 1
    %s27 = scalar_select %p24, %s25, %s26
    %p30 = pneg %p24
    %p31 = scmp.eq.s32.totalorder %s15, 1
    %p32 = por %p30, %p31
    %p33 = scmp.ne.s32.totalorder %s25, %s28
    %p34 = scmp.eq.s32.totalorder %s15, 0
    %p35 = por %p33, %p34
    %p36 = scmp.ne.s32.totalorder %s25, %s28
    %p37 = scmp.eq.s32.totalorder %s20, 1
    %p38 = por %p36, %p37
    %p39 = scmp.ne.s32.totalorder %s28, %s29
    %p40 = scmp.eq.s32.totalorder %s20, 0
    %p41 = por %p39, %p40
    %p42 = scmp.ne.s32.totalorder %s28, %s29
    %p43 = scmp.eq.s32.totalorder %s21, 1
    %p44 = por %p42, %p43
    %p46 = scmp.ne.s32.totalorder %s29, %s45
    %p47 = scmp.eq.s32.totalorder %s21, 0
    %p48 = por %p46, %p47
    %s50 = sadd.s32 %s49, 1
    %p53 = scmp.eq.s32.totalorder %s15, 1
    %p54 = scmp.ne.s32.totalorder %s49, %s51
    %p55 = scmp.eq.s32.totalorder %s15, 0
    %p56 = por %p54, %p55
    %p57 = scmp.ne.s32.totalorder %s49, %s51
    %p58 = scmp.eq.s32.totalorder %s20, 1
    %p59 = por %p57, %p58
    %p60 = scmp.ne.s32.totalorder %s51, %s52
    %p61 = scmp.eq.s32.totalorder %s20, 0
    %p62 = por %p60, %p61
    %p63 = scmp.ne.s32.totalorder %s51, %s52
    %p64 = scmp.eq.s32.totalorder %s21, 1
    %p65 = por %p63, %p64
    %p67 = scmp.ne.s32.totalorder %s52, %s66
    %p68 = scmp.eq.s32.totalorder %s21, 0
    %p69 = por %p67, %p68
    %s71 = sadd.s32 %s70, 1
    %p74 = scmp.eq.s32.totalorder %s15, 1
    %p75 = scmp.ne.s32.totalorder %s70, %s72
    %p76 = scmp.eq.s32.totalorder %s15, 0
    %p77 = por %p75, %p76
    %p78 = scmp.ne.s32.totalorder %s70, %s72
    %p79 = scmp.eq.s32.totalorder %s20, 1
    %p80 = por %p78, %p79
    %p81 = scmp.ne.s32.totalorder %s72, %s73
    %p82 = scmp.eq.s32.totalorder %s20, 0
    %p83 = por %p81, %p82
    %p84 = scmp.ne.s32.totalorder %s72, %s73
    %p85 = scmp.eq.s32.totalorder %s21, 1
    %p86 = por %p84, %p85
    %p88 = scmp.ne.s32.totalorder %s73, %s87
    %p89 = scmp.eq.s32.totalorder %s21, 0
    %p90 = por %p88, %p89
    %s92 = sadd.s32 %s91, 1
    %p95 = scmp.eq.s32.totalorder %s15, 1
    %p96 = scmp.ne.s32.totalorder %s91, %s93
    %p97 = scmp.eq.s32.totalorder %s15, 0
    %p98 = por %p96, %p97
    %p99 = scmp.ne.s32.totalorder %s91, %s93
    %p100 = scmp.eq.s32.totalorder %s20, 1
    %p101 = por %p99, %p100
    %p102 = scmp.ne.s32.totalorder %s93, %s94
    %p103 = scmp.eq.s32.totalorder %s20, 0
    %p104 = por %p102, %p103
    %p105 = scmp.ne.s32.totalorder %s93, %s94
    %p106 = scmp.eq.s32.totalorder %s21, 1
    %p107 = por %p105, %p106
    %p109 = scmp.ne.s32.totalorder %s94, %s108
    %p110 = scmp.eq.s32.totalorder %s21, 0
    %p111 = por %p109, %p110
    %s113 = sadd.s32 %s112, 1
    %p116 = scmp.eq.s32.totalorder %s15, 1
    %p117 = scmp.ne.s32.totalorder %s112, %s114
    %p118 = scmp.eq.s32.totalorder %s15, 0
    %p119 = por %p117, %p118
    %p120 = scmp.ne.s32.totalorder %s112, %s114
    %p121 = scmp.eq.s32.totalorder %s20, 1
    %p122 = por %p120, %p121
    %p123 = scmp.ne.s32.totalorder %s114, %s115
    %p124 = scmp.eq.s32.totalorder %s20, 0
    %p125 = por %p123, %p124
    %p126 = scmp.ne.s32.totalorder %s114, %s115
    %p127 = scmp.eq.s32.totalorder %s21, 1
    %p128 = por %p126, %p127
    %p130 = scmp.ne.s32.totalorder %s115, %s129
    %p131 = scmp.eq.s32.totalorder %s21, 0
    %p132 = por %p130, %p131
    %s134 = sadd.s32 %s133, 1
    %p137 = scmp.eq.s32.totalorder %s15, 1
    %p138 = scmp.ne.s32.totalorder %s133, %s135
    %p139 = scmp.eq.s32.totalorder %s15, 0
    %p140 = por %p138, %p139
    %p141 = scmp.ne.s32.totalorder %s133, %s135
    %p142 = scmp.eq.s32.totalorder %s20, 1
    %p143 = por %p141, %p142
    %p144 = scmp.ne.s32.totalorder %s135, %s136
    %p145 = scmp.eq.s32.totalorder %s20, 0
    %p146 = por %p144, %p145
    %p147 = scmp.ne.s32.totalorder %s135, %s136
    %p148 = scmp.eq.s32.totalorder %s21, 1
    %p149 = por %p147, %p148
    %p151 = scmp.ne.s32.totalorder %s136, %s150
    %p152 = scmp.eq.s32.totalorder %s21, 0
    %p153 = por %p151, %p152
    %s155 = sadd.s32 %s154, 1
    %p158 = scmp.eq.s32.totalorder %s15, 1
    %p159 = scmp.ne.s32.totalorder %s154, %s156
    %p160 = scmp.eq.s32.totalorder %s15, 0
    %p161 = por %p159, %p160
    %p162 = scmp.ne.s32.totalorder %s154, %s156
    %p163 = scmp.eq.s32.totalorder %s20, 1
    %p164 = por %p162, %p163
    %p165 = scmp.ne.s32.totalorder %s156, %s157
    %p166 = scmp.eq.s32.totalorder %s20, 0
    %p167 = por %p165, %p166
    %p168 = scmp.ne.s32.totalorder %s156, %s157
    %p169 = scmp.eq.s32.totalorder %s21, 1
    %p170 = por %p168, %p169
    %p172 = scmp.ne.s32.totalorder %s157, %s171
    %p173 = scmp.eq.s32.totalorder %s21, 0
    %p174 = por %p172, %p173
    %s176 = sadd.s32 %s175, 1
    %p179 = scmp.eq.s32.totalorder %s15, 1
    %p180 = scmp.ne.s32.totalorder %s175, %s177
    %p181 = scmp.eq.s32.totalorder %s15, 0
    %p182 = por %p180, %p181
    %p183 = scmp.ne.s32.totalorder %s175, %s177
    %p184 = scmp.eq.s32.totalorder %s20, 1
    %p185 = por %p183, %p184
    %p186 = scmp.ne.s32.totalorder %s177, %s178
    %p187 = scmp.eq.s32.totalorder %s20, 0
    %p188 = por %p186, %p187
    %p189 = scmp.ne.s32.totalorder %s177, %s178
    %p190 = scmp.eq.s32.totalorder %s21, 1
    %p191 = por %p189, %p190
    %p193 = scmp.ne.s32.totalorder %s178, %s192
    %p194 = scmp.eq.s32.totalorder %s21, 0
    %p195 = por %p193, %p194
    %s197 = sadd.s32 %s196, 1
    %p200 = scmp.eq.s32.totalorder %s15, 1
    %p201 = scmp.ne.s32.totalorder %s196, %s198
    %p202 = scmp.eq.s32.totalorder %s15, 0
    %p203 = por %p201, %p202
    %p204 = scmp.ne.s32.totalorder %s196, %s198
    %p205 = scmp.eq.s32.totalorder %s20, 1
    %p206 = por %p204, %p205
    %p207 = scmp.ne.s32.totalorder %s198, %s199
    %p208 = scmp.eq.s32.totalorder %s20, 0
    %p209 = por %p207, %p208
    %p210 = scmp.ne.s32.totalorder %s198, %s199
    %p211 = scmp.eq.s32.totalorder %s21, 1
    %p212 = por %p210, %p211
    %p214 = scmp.ne.s32.totalorder %s199, %s213
    %p215 = scmp.eq.s32.totalorder %s21, 0
    %p216 = por %p214, %p215
    %s217 = ssub.s32 %s15, %s22
    %p218 = scmp.eq.s32.totalorder %s217, 0
    %s220 = sadd.s32 %s219, 1
    %s221 = scalar_select %p218, %s219, %s220
    %p224 = pneg %p218
    %p225 = scmp.eq.s32.totalorder %s15, 1
    %p226 = por %p224, %p225
    %p227 = scmp.ne.s32.totalorder %s219, %s222
    %p228 = scmp.eq.s32.totalorder %s15, 0
    %p229 = por %p227, %p228
    %p230 = scmp.ne.s32.totalorder %s219, %s222
    %p231 = scmp.eq.s32.totalorder %s20, 1
    %p232 = por %p230, %p231
    %p233 = scmp.ne.s32.totalorder %s222, %s223
    %p234 = scmp.eq.s32.totalorder %s20, 0
    %p235 = por %p233, %p234
    %p236 = scmp.ne.s32.totalorder %s222, %s223
    %p237 = scmp.eq.s32.totalorder %s21, 1
    %p238 = por %p236, %p237
    %p240 = scmp.ne.s32.totalorder %s223, %s239
    %p241 = scmp.eq.s32.totalorder %s21, 0
    %p242 = por %p240, %p241
    %p243 = scmp.le.s32.totalorder 1, %s15
    %p244 = scmp.lt.s32.totalorder %s15, 3
    %p245 = pnand %p243, %p244
    %p246 = pneg %p245
    // Predicated region
    $region9: #{msie_forward.1} parent=5 // pred_check
      _
    $region10: #{msie_forward.1} parent=5 // pred_check_branch
      %248 = sbr.rel (%p245) target = $region12
    $region11: #{msie_forward.1} parent=5 // pred_region
      %s249 = ssub.s32 %s15, 1
      // Predicated region
      $region13: #{msie_forward.1} parent=11 // pred_check
        %p250 = pneg %p62
      $region14: #{msie_forward.1} parent=11 // pred_check_branch
        %252 = sbr.rel (%p250) target = $region16
      $region15: #{msie_forward.1} parent=11 // pred_region
        _
      $region16: #{msie_forward.1} parent=11 // pred_fallthru
        _
      // Predicated region
      $region17: #{msie_forward.1} parent=11 // pred_check
        %p253 = pneg %p83
      $region18: #{msie_forward.1} parent=11 // pred_check_branch
        %255 = sbr.rel (%p253) target = $region20
      $region19: #{msie_forward.1} parent=11 // pred_region
        _
      $region20: #{msie_forward.1} parent=11 // pred_fallthru
        _
      // Predicated region
      $region21: #{msie_forward.1} parent=11 // pred_check
        %p256 = pneg %p104
      $region22: #{msie_forward.1} parent=11 // pred_check_branch
        %258 = sbr.rel (%p256) target = $region24
      $region23: #{msie_forward.1} parent=11 // pred_region
        _
      $region24: #{msie_forward.1} parent=11 // pred_fallthru
        _
      // Predicated region
      $region25: #{msie_forward.1} parent=11 // pred_check
        %p259 = pneg %p125
      $region26: #{msie_forward.1} parent=11 // pred_check_branch
        %261 = sbr.rel (%p259) target = $region28
      $region27: #{msie_forward.1} parent=11 // pred_region
        _
      $region28: #{msie_forward.1} parent=11 // pred_fallthru
        _
      // Predicated region
      $region29: #{msie_forward.1} parent=11 // pred_check
        %p262 = pneg %p146
      $region30: #{msie_forward.1} parent=11 // pred_check_branch
        %264 = sbr.rel (%p262) target = $region32
      $region31: #{msie_forward.1} parent=11 // pred_region
        _
      $region32: #{msie_forward.1} parent=11 // pred_fallthru
        _
      // Predicated region
      $region33: #{msie_forward.1} parent=11 // pred_check
        %p265 = pneg %p167
      $region34: #{msie_forward.1} parent=11 // pred_check_branch
        %267 = sbr.rel (%p265) target = $region36
      $region35: #{msie_forward.1} parent=11 // pred_region
        _
      $region36: #{msie_forward.1} parent=11 // pred_fallthru
        _
      // Predicated region
      $region37: #{msie_forward.1} parent=11 // pred_check
        %p268 = pneg %p188
      $region38: #{msie_forward.1} parent=11 // pred_check_branch
        %270 = sbr.rel (%p268) target = $region40
      $region39: #{msie_forward.1} parent=11 // pred_region
        _
      $region40: #{msie_forward.1} parent=11 // pred_fallthru
        _
      // Predicated region
      $region41: #{msie_forward.1} parent=11 // pred_check
        %p271 = pneg %p209
      $region42: #{msie_forward.1} parent=11 // pred_check_branch
        %273 = sbr.rel (%p271) target = $region44
      $region43: #{msie_forward.1} parent=11 // pred_region
        _
      $region44: #{msie_forward.1} parent=11 // pred_fallthru
        _
    $region12: #{msie_forward.1} parent=5 // pred_fallthru
      _
    %p274 = scmp.lt.s32.totalorder %s15, 2
    // Predicated region
    $region45: #{msie_forward.1} parent=5 // pred_check
      %p275 = pneg %p274
    $region46: #{msie_forward.1} parent=5 // pred_check_branch
      %277 = sbr.rel (%p275) target = $region48
    $region47: #{msie_forward.1} parent=5 // pred_region
      // Predicated region
      $region49: #{msie_forward.1} parent=47 // pred_check
        %p278 = pneg %p35
      $region50: #{msie_forward.1} parent=47 // pred_check_branch
        %280 = sbr.rel (%p278) target = $region52
      $region51: #{msie_forward.1} parent=47 // pred_region
        %p281 = scmp.lt.s32.totalorder %s15, 1
        %s282 = scalar_select %p281, %s15, 1
        %s283 = smul.addr %s282, 2
        %s284 = smul.addr %s283, 8
        %s285 = scalar_lea.vmem %s0, %s284
      $region52: #{msie_forward.1} parent=47 // pred_fallthru
        _
    $region48: #{msie_forward.1} parent=5 // pred_fallthru
      _
    %p286 = scmp.le.s32.totalorder 1, %s15
    %p287 = scmp.lt.s32.totalorder %s15, 3
    %p288 = pnand %p286, %p287
    %p289 = pneg %p288
    // Predicated region
    $region53: #{msie_forward.1} parent=5 // pred_check
      _
    $region54: #{msie_forward.1} parent=5 // pred_check_branch
      %291 = sbr.rel (%p288) target = $region56
    $region55: #{msie_forward.1} parent=5 // pred_region
      %s292 = ssub.s32 %s15, 1
      %p293 = scmp.lt.s32.totalorder %s20, 1
      %s294 = scalar_select %p293, %s20, 1
      %s295 = smul.addr %s294, 2
      %s296 = smul.addr %s295, 8
      %s297 = scalar_lea.vmem %s0, %s296
      %p298 = pneg %p41
      %p299 = pneg %p38
      %p300 = pneg %p62
      %p301 = pneg %p59
      %p302 = pneg %p83
      %p303 = pneg %p80
      %p304 = pneg %p104
      %p305 = pneg %p101
      %p306 = pneg %p125
      %p307 = pneg %p122
      %p308 = pneg %p146
      %p309 = pneg %p143
      %p310 = pneg %p167
      %p311 = pneg %p164
      %p312 = pneg %p188
      %p313 = pneg %p185
      %p314 = pneg %p209
      %p315 = pneg %p206
      %p316 = pneg %p235
      %p317 = pneg %p232
      %p318 = scmp.lt.s32.totalorder %s20, 1
      %s319 = scalar_select %p318, %s20, 1
      %s320 = smul.addr %s319, 2
      %s321 = smul.addr %s320, 8
      %s322 = scalar_lea.vmem %s9, %s321
      %p323 = scmp.lt.s32.totalorder %s20, 1
      %s324 = scalar_select %p323, %s20, 1
      %s325 = smul.addr %s324, 2
      %s326 = smul.addr %s325, 8
      %s327 = scalar_lea.vmem %s0, %s326
      %p328 = scmp.lt.s32.totalorder %s20, 1
      %s329 = scalar_select %p328, %s20, 1
      %s330 = smul.addr %s329, 2
      %s331 = smul.addr %s330, 8
      %s332 = scalar_lea.vmem %s9, %s331
      %v333 = vld [vmem:[%s327] sm:$0xff]
      %v334 = vld [vmem:[%s327 + $0x8] sm:$0xff]
      %vm335 = vcmask 518144
      %336 = vst.msk [vmem:[#allocation2] sm:$0x7] %vm335, 0.0
      %337 = vst.msk [vmem:[#allocation2 + $0x13] sm:$0x7] %vm335, 0.0
      %vm338 = vcmask 523264
      %339 = vst.msk [vmem:[#allocation2 + $0x3] sm:$0xff] %vm338, %v333
      %340 = vst.msk [vmem:[#allocation2 + $0xb] sm:$0xff] %vm338, %v334
      %v341 = vld [vmem:[#allocation2] sm:$0xff]
      %v342 = vld [vmem:[#allocation2 + $0x8] sm:$0xff]
      %v343 = vld [vmem:[%s1] sm:$0xff]
      %v344 = vld [vmem:[%s1 + $0x8] sm:$0xff]
      %v345 = vld [vmem:[%s1 + $0x10] sm:$0xff]
      %v346 = vld [vmem:[%s1 + $0x18] sm:$0xff]
      %v347 = vld [vmem:[%s1 + $0x20] sm:$0xff]
      %v348 = vld [vmem:[%s1 + $0x28] sm:$0xff]
      %v349 = vld [vmem:[%s1 + $0x30] sm:$0xff]
      %v350 = vld [vmem:[%s1 + $0x38] sm:$0xff]
      %v351 = vld [vmem:[#allocation2 + $0x1] sm:$0xff]
      %v352 = vld [vmem:[#allocation2 + $0x9] sm:$0xff]
      %s353 = scalar_lea.vmem %s1, 64
      %v354 = vld [vmem:[%s353] sm:$0xff]
      %v355 = vld [vmem:[%s353 + $0x8] sm:$0xff]
      %v356 = vld [vmem:[%s353 + $0x10] sm:$0xff]
      %v357 = vld [vmem:[%s353 + $0x18] sm:$0xff]
      %v358 = vld [vmem:[%s353 + $0x20] sm:$0xff]
      %v359 = vld [vmem:[%s353 + $0x28] sm:$0xff]
      %v360 = vld [vmem:[%s353 + $0x30] sm:$0xff]
      %v361 = vld [vmem:[%s353 + $0x38] sm:$0xff]
      %v363 = vsel %vm338, %v351, 0
      %v366 = vsel %vm338, %v352, 0
      %368 = vmatprep.subr.mxu0 0.0
      %369 = vmatpush1.msra.mxu0 %v354
      %370 = vmatprep.subr.mxu0 0.0
      %371 = vmatpush1.msra.mxu0 %v355
      %372 = vmatprep.subr.mxu0 0.0
      %373 = vmatpush1.msra.mxu0 %v356
      %374 = vmatprep.subr.mxu0 0.0
      %375 = vmatpush1.msra.mxu0 %v357
      %376 = vmatprep.subr.mxu0 0.0
      %377 = vmatpush1.msra.mxu0 %v358
      %378 = vmatprep.subr.mxu0 0.0
      %379 = vmatpush1.msra.mxu0 %v359
      %380 = vmatprep.subr.mxu0 0.0
      %381 = vmatpush1.msra.mxu0 %v360
      %382 = vmatprep.subr.mxu0 0.0
      %383 = vmatpush1.msra.mxu0 %v361
      %384 = vmatprep.subr.mxu0 0.0
      %385 = vmatpush1.msra.mxu0 0.0
      %386 = vmatprep.subr.mxu0 0.0
      %387 = vmatpush1.msra.mxu0 0.0
      %388 = vmatprep.subr.mxu0 0.0
      %389 = vmatpush1.msra.mxu0 0.0
      %390 = vmatprep.subr.mxu0 0.0
      %391 = vmatpush1.msra.mxu0 0.0
      %392 = vmatprep.subr.mxu0 0.0
      %393 = vmatpush1.msra.mxu0 0.0
      %394 = vmatprep.subr.mxu0 0.0
      %395 = vmatpush1.msra.mxu0 0.0
      %396 = vmatprep.subr.mxu0 0.0
      %397 = vmatpush1.msra.mxu0 0.0
      %398 = vmatprep.subr.mxu0 0.0
      %399 = vmatpush1.msra.mxu0 0.0
      %400 = vmatprep.subr.mxu0 0.0
      %401 = vmatpush1.msra.mxu0 0.0
      %402 = vmatprep.subr.mxu0 0.0
      %403 = vmatpush1.msra.mxu0 0.0
      %404 = vmatprep.subr.mxu0 0.0
      %405 = vmatpush1.msra.mxu0 0.0
      %406 = vmatprep.subr.mxu0 0.0
      %407 = vmatpush1.msra.mxu0 0.0
      %408 = vmatprep.subr.mxu0 0.0
      %409 = vmatpush1.msra.mxu0 0.0
      %410 = vmatprep.subr.mxu0 0.0
      %411 = vmatpush1.msra.mxu0 0.0
      %412 = vmatprep.subr.mxu0 0.0
      %413 = vmatpush1.msra.mxu0 0.0
      %414 = vmatprep.subr.mxu0 0.0
      %415 = vmatpush1.msra.mxu0 0.0
      %416 = vmatprep.subr.mxu0 0.0
      %417 = vmatpush1.msra.mxu0 0.0
      %418 = vmatprep.subr.mxu0 0.0
      %419 = vmatpush1.msra.mxu0 0.0
      %420 = vmatprep.subr.mxu0 0.0
      %421 = vmatpush1.msra.mxu0 0.0
      %422 = vmatprep.subr.mxu0 0.0
      %423 = vmatpush1.msra.mxu0 0.0
      %424 = vmatprep.subr.mxu0 0.0
      %425 = vmatpush1.msra.mxu0 0.0
      %426 = vmatprep.subr.mxu0 0.0
      %427 = vmatpush1.msra.mxu0 0.0
      %428 = vmatprep.subr.mxu0 0.0
      %429 = vmatpush1.msra.mxu0 0.0
      %430 = vmatprep.subr.mxu0 0.0
      %431 = vmatpush1.msra.mxu0 0.0
      %432 = vmatprep.mubr.f32.mxu0 0.0
      %433 = vmatmul.mubr.f32.gmra.mrb[0].mxu0 %v363
      %v434 = vpop.f32.mrb[0].mxu0
      %v435 = vadd.f32 0.0, %v434
      %v436 = vpop.f32.mrb[0].mxu0
      %437 = vmatprep.mubr.f32.mxu0 0.0
      %438 = vmatmul.mubr.f32.gmra.mrb[0].mxu0 %v366
      %v439 = vpop.f32.mrb[0].mxu0
      %v440 = vadd.f32 0.0, %v439
      %v441 = vpop.f32.mrb[0].mxu0
      %442 = vdwg.mxu0
      %v444 = vsel %vm338, %v341, 0
      %v447 = vsel %vm338, %v342, 0
      %449 = vmatprep.subr.mxu0 0.0
      %450 = vmatpush1.msra.mxu0 %v343
      %451 = vmatprep.subr.mxu0 0.0
      %452 = vmatpush1.msra.mxu0 %v344
      %453 = vmatprep.subr.mxu0 0.0
      %454 = vmatpush1.msra.mxu0 %v345
      %455 = vmatprep.subr.mxu0 0.0
      %456 = vmatpush1.msra.mxu0 %v346
      %457 = vmatprep.subr.mxu0 0.0
      %458 = vmatpush1.msra.mxu0 %v347
      %459 = vmatprep.subr.mxu0 0.0
      %460 = vmatpush1.msra.mxu0 %v348
      %461 = vmatprep.subr.mxu0 0.0
      %462 = vmatpush1.msra.mxu0 %v349
      %463 = vmatprep.subr.mxu0 0.0
      %464 = vmatpush1.msra.mxu0 %v350
      %465 = vmatprep.subr.mxu0 0.0
      %466 = vmatpush1.msra.mxu0 0.0
      %467 = vmatprep.subr.mxu0 0.0
      %468 = vmatpush1.msra.mxu0 0.0
      %469 = vmatprep.subr.mxu0 0.0
      %470 = vmatpush1.msra.mxu0 0.0
      %471 = vmatprep.subr.mxu0 0.0
      %472 = vmatpush1.msra.mxu0 0.0
      %473 = vmatprep.subr.mxu0 0.0
      %474 = vmatpush1.msra.mxu0 0.0
      %475 = vmatprep.subr.mxu0 0.0
      %476 = vmatpush1.msra.mxu0 0.0
      %477 = vmatprep.subr.mxu0 0.0
      %478 = vmatpush1.msra.mxu0 0.0
      %479 = vmatprep.subr.mxu0 0.0
      %480 = vmatpush1.msra.mxu0 0.0
      %481 = vmatprep.subr.mxu0 0.0
      %482 = vmatpush1.msra.mxu0 0.0
      %483 = vmatprep.subr.mxu0 0.0
      %484 = vmatpush1.msra.mxu0 0.0
      %485 = vmatprep.subr.mxu0 0.0
      %486 = vmatpush1.msra.mxu0 0.0
      %487 = vmatprep.subr.mxu0 0.0
      %488 = vmatpush1.msra.mxu0 0.0
      %489 = vmatprep.subr.mxu0 0.0
      %490 = vmatpush1.msra.mxu0 0.0
      %491 = vmatprep.subr.mxu0 0.0
      %492 = vmatpush1.msra.mxu0 0.0
      %493 = vmatprep.subr.mxu0 0.0
      %494 = vmatpush1.msra.mxu0 0.0
      %495 = vmatprep.subr.mxu0 0.0
      %496 = vmatpush1.msra.mxu0 0.0
      %497 = vmatprep.subr.mxu0 0.0
      %498 = vmatpush1.msra.mxu0 0.0
      %499 = vmatprep.subr.mxu0 0.0
      %500 = vmatpush1.msra.mxu0 0.0
      %501 = vmatprep.subr.mxu0 0.0
      %502 = vmatpush1.msra.mxu0 0.0
      %503 = vmatprep.subr.mxu0 0.0
      %504 = vmatpush1.msra.mxu0 0.0
      %505 = vmatprep.subr.mxu0 0.0
      %506 = vmatpush1.msra.mxu0 0.0
      %507 = vmatprep.subr.mxu0 0.0
      %508 = vmatpush1.msra.mxu0 0.0
      %509 = vmatprep.subr.mxu0 0.0
      %510 = vmatpush1.msra.mxu0 0.0
      %511 = vmatprep.subr.mxu0 0.0
      %512 = vmatpush1.msra.mxu0 0.0
      %513 = vmatprep.mubr.f32.mxu0 0.0
      %514 = vmatmul.mubr.f32.gmra.mrb[0].mxu0 %v444
      %v515 = vpop.f32.mrb[0].mxu0
      %v516 = vadd.f32 %v435, %v515
      %v517 = vpop.f32.mrb[0].mxu0
      %518 = vmatprep.mubr.f32.mxu0 0.0
      %519 = vmatmul.mubr.f32.gmra.mrb[0].mxu0 %v447
      %v520 = vpop.f32.mrb[0].mxu0
      %v521 = vadd.f32 %v440, %v520
      %v522 = vpop.f32.mrb[0].mxu0
      %523 = vdwg.mxu0
      %v524 = vld [vmem:[#allocation2 + $0x2] sm:$0xff]
      %v525 = vld [vmem:[#allocation2 + $0xa] sm:$0xff]
      %s526 = scalar_lea.vmem %s1, 128
      %v527 = vld [vmem:[%s526] sm:$0xff]
      %v528 = vld [vmem:[%s526 + $0x8] sm:$0xff]
      %v529 = vld [vmem:[%s526 + $0x10] sm:$0xff]
      %v530 = vld [vmem:[%s526 + $0x18] sm:$0xff]
      %v531 = vld [vmem:[%s526 + $0x20] sm:$0xff]
      %v532 = vld [vmem:[%s526 + $0x28] sm:$0xff]
      %v533 = vld [vmem:[%s526 + $0x30] sm:$0xff]
      %v534 = vld [vmem:[%s526 + $0x38] sm:$0xff]
      %v536 = vsel %vm338, %v524, 0
      %v539 = vsel %vm338, %v525, 0
      %541 = vmatprep.subr.mxu0 0.0
      %542 = vmatpush1.msra.mxu0 %v527
      %543 = vmatprep.subr.mxu0 0.0
      %544 = vmatpush1.msra.mxu0 %v528
      %545 = vmatprep.subr.mxu0 0.0
      %546 = vmatpush1.msra.mxu0 %v529
      %547 = vmatprep.subr.mxu0 0.0
      %548 = vmatpush1.msra.mxu0 %v530
      %549 = vmatprep.subr.mxu0 0.0
      %550 = vmatpush1.msra.mxu0 %v531
      %551 = vmatprep.subr.mxu0 0.0
      %552 = vmatpush1.msra.mxu0 %v532
      %553 = vmatprep.subr.mxu0 0.0
      %554 = vmatpush1.msra.mxu0 %v533
      %555 = vmatprep.subr.mxu0 0.0
      %556 = vmatpush1.msra.mxu0 %v534
      %557 = vmatprep.subr.mxu0 0.0
      %558 = vmatpush1.msra.mxu0 0.0
      %559 = vmatprep.subr.mxu0 0.0
      %560 = vmatpush1.msra.mxu0 0.0
      %561 = vmatprep.subr.mxu0 0.0
      %562 = vmatpush1.msra.mxu0 0.0
      %563 = vmatprep.subr.mxu0 0.0
      %564 = vmatpush1.msra.mxu0 0.0
      %565 = vmatprep.subr.mxu0 0.0
      %566 = vmatpush1.msra.mxu0 0.0
      %567 = vmatprep.subr.mxu0 0.0
      %568 = vmatpush1.msra.mxu0 0.0
      %569 = vmatprep.subr.mxu0 0.0
      %570 = vmatpush1.msra.mxu0 0.0
      %571 = vmatprep.subr.mxu0 0.0
      %572 = vmatpush1.msra.mxu0 0.0
      %573 = vmatprep.subr.mxu0 0.0
      %574 = vmatpush1.msra.mxu0 0.0
      %575 = vmatprep.subr.mxu0 0.0
      %576 = vmatpush1.msra.mxu0 0.0
      %577 = vmatprep.subr.mxu0 0.0
      %578 = vmatpush1.msra.mxu0 0.0
      %579 = vmatprep.subr.mxu0 0.0
      %580 = vmatpush1.msra.mxu0 0.0
      %581 = vmatprep.subr.mxu0 0.0
      %582 = vmatpush1.msra.mxu0 0.0
      %583 = vmatprep.subr.mxu0 0.0
      %584 = vmatpush1.msra.mxu0 0.0
      %585 = vmatprep.subr.mxu0 0.0
      %586 = vmatpush1.msra.mxu0 0.0
      %587 = vmatprep.subr.mxu0 0.0
      %588 = vmatpush1.msra.mxu0 0.0
      %589 = vmatprep.subr.mxu0 0.0
      %590 = vmatpush1.msra.mxu0 0.0
      %591 = vmatprep.subr.mxu0 0.0
      %592 = vmatpush1.msra.mxu0 0.0
      %593 = vmatprep.subr.mxu0 0.0
      %594 = vmatpush1.msra.mxu0 0.0
      %595 = vmatprep.subr.mxu0 0.0
      %596 = vmatpush1.msra.mxu0 0.0
      %597 = vmatprep.subr.mxu0 0.0
      %598 = vmatpush1.msra.mxu0 0.0
      %599 = vmatprep.subr.mxu0 0.0
      %600 = vmatpush1.msra.mxu0 0.0
      %601 = vmatprep.subr.mxu0 0.0
      %602 = vmatpush1.msra.mxu0 0.0
      %603 = vmatprep.subr.mxu0 0.0
      %604 = vmatpush1.msra.mxu0 0.0
      %605 = vmatprep.mubr.f32.mxu0 0.0
      %606 = vmatmul.mubr.f32.gmra.mrb[0].mxu0 %v536
      %v607 = vpop.f32.mrb[0].mxu0
      %v608 = vadd.f32 0.0, %v607
      %v609 = vpop.f32.mrb[0].mxu0
      %610 = vmatprep.mubr.f32.mxu0 0.0
      %611 = vmatmul.mubr.f32.gmra.mrb[0].mxu0 %v539
      %v612 = vpop.f32.mrb[0].mxu0
      %v613 = vadd.f32 0.0, %v612
      %v614 = vpop.f32.mrb[0].mxu0
      %615 = vdwg.mxu0
      %v616 = vadd.f32 %v516, %v608
      %v617 = vadd.f32 %v521, %v613
      %v618 = vld [vmem:[#allocation2 + $0x3] sm:$0xff]
      %v619 = vld [vmem:[#allocation2 + $0xb] sm:$0xff]
      %s620 = scalar_lea.vmem %s1, 192
      %v621 = vld [vmem:[%s620] sm:$0xff]
      %v622 = vld [vmem:[%s620 + $0x8] sm:$0xff]
      %v623 = vld [vmem:[%s620 + $0x10] sm:$0xff]
      %v624 = vld [vmem:[%s620 + $0x18] sm:$0xff]
      %v625 = vld [vmem:[%s620 + $0x20] sm:$0xff]
      %v626 = vld [vmem:[%s620 + $0x28] sm:$0xff]
      %v627 = vld [vmem:[%s620 + $0x30] sm:$0xff]
      %v628 = vld [vmem:[%s620 + $0x38] sm:$0xff]
      %v630 = vsel %vm338, %v618, 0
      %v633 = vsel %vm338, %v619, 0
      %635 = vmatprep.subr.mxu0 0.0
      %636 = vmatpush1.msra.mxu0 %v621
      %637 = vmatprep.subr.mxu0 0.0
      %638 = vmatpush1.msra.mxu0 %v622
      %639 = vmatprep.subr.mxu0 0.0
      %640 = vmatpush1.msra.mxu0 %v623
      %641 = vmatprep.subr.mxu0 0.0
      %642 = vmatpush1.msra.mxu0 %v624
      %643 = vmatprep.subr.mxu0 0.0
      %644 = vmatpush1.msra.mxu0 %v625
      %645 = vmatprep.subr.mxu0 0.0
      %646 = vmatpush1.msra.mxu0 %v626
      %647 = vmatprep.subr.mxu0 0.0
      %648 = vmatpush1.msra.mxu0 %v627
      %649 = vmatprep.subr.mxu0 0.0
      %650 = vmatpush1.msra.mxu0 %v628
      %651 = vmatprep.subr.mxu0 0.0
      %652 = vmatpush1.msra.mxu0 0.0
      %653 = vmatprep.subr.mxu0 0.0
      %654 = vmatpush1.msra.mxu0 0.0
      %655 = vmatprep.subr.mxu0 0.0
      %656 = vmatpush1.msra.mxu0 0.0
      %657 = vmatprep.subr.mxu0 0.0
      %658 = vmatpush1.msra.mxu0 0.0
      %659 = vmatprep.subr.mxu0 0.0
      %660 = vmatpush1.msra.mxu0 0.0
      %661 = vmatprep.subr.mxu0 0.0
      %662 = vmatpush1.msra.mxu0 0.0
      %663 = vmatprep.subr.mxu0 0.0
      %664 = vmatpush1.msra.mxu0 0.0
      %665 = vmatprep.subr.mxu0 0.0
      %666 = vmatpush1.msra.mxu0 0.0
      %667 = vmatprep.subr.mxu0 0.0
      %668 = vmatpush1.msra.mxu0 0.0
      %669 = vmatprep.subr.mxu0 0.0
      %670 = vmatpush1.msra.mxu0 0.0
      %671 = vmatprep.subr.mxu0 0.0
      %672 = vmatpush1.msra.mxu0 0.0
      %673 = vmatprep.subr.mxu0 0.0
      %674 = vmatpush1.msra.mxu0 0.0
      %675 = vmatprep.subr.mxu0 0.0
      %676 = vmatpush1.msra.mxu0 0.0
      %677 = vmatprep.subr.mxu0 0.0
      %678 = vmatpush1.msra.mxu0 0.0
      %679 = vmatprep.subr.mxu0 0.0
      %680 = vmatpush1.msra.mxu0 0.0
      %681 = vmatprep.subr.mxu0 0.0
      %682 = vmatpush1.msra.mxu0 0.0
      %683 = vmatprep.subr.mxu0 0.0
      %684 = vmatpush1.msra.mxu0 0.0
      %685 = vmatprep.subr.mxu0 0.0
      %686 = vmatpush1.msra.mxu0 0.0
      %687 = vmatprep.subr.mxu0 0.0
      %688 = vmatpush1.msra.mxu0 0.0
      %689 = vmatprep.subr.mxu0 0.0
      %690 = vmatpush1.msra.mxu0 0.0
      %691 = vmatprep.subr.mxu0 0.0
      %692 = vmatpush1.msra.mxu0 0.0
      %693 = vmatprep.subr.mxu0 0.0
      %694 = vmatpush1.msra.mxu0 0.0
      %695 = vmatprep.subr.mxu0 0.0
      %696 = vmatpush1.msra.mxu0 0.0
      %697 = vmatprep.subr.mxu0 0.0
      %698 = vmatpush1.msra.mxu0 0.0
      %699 = vmatprep.mubr.f32.mxu0 0.0
      %700 = vmatmul.mubr.f32.gmra.mrb[0].mxu0 %v630
      %v701 = vpop.f32.mrb[0].mxu0
      %v702 = vadd.f32 0.0, %v701
      %v703 = vpop.f32.mrb[0].mxu0
      %704 = vmatprep.mubr.f32.mxu0 0.0
      %705 = vmatmul.mubr.f32.gmra.mrb[0].mxu0 %v633
      %v706 = vpop.f32.mrb[0].mxu0
      %v707 = vadd.f32 0.0, %v706
      %v708 = vpop.f32.mrb[0].mxu0
      %709 = vdwg.mxu0
      %v710 = vadd.f32 %v616, %v702
      %v711 = vadd.f32 %v617, %v707
      %v712 = vld [vmem:[#allocation2 + $0x4] sm:$0xff]
      %v713 = vld [vmem:[#allocation2 + $0xc] sm:$0xff]
      %s714 = scalar_lea.vmem %s1, 256
      %v715 = vld [vmem:[%s714] sm:$0xff]
      %v716 = vld [vmem:[%s714 + $0x8] sm:$0xff]
      %v717 = vld [vmem:[%s714 + $0x10] sm:$0xff]
      %v718 = vld [vmem:[%s714 + $0x18] sm:$0xff]
      %v719 = vld [vmem:[%s714 + $0x20] sm:$0xff]
      %v720 = vld [vmem:[%s714 + $0x28] sm:$0xff]
      %v721 = vld [vmem:[%s714 + $0x30] sm:$0xff]
      %v722 = vld [vmem:[%s714 + $0x38] sm:$0xff]
      %v724 = vsel %vm338, %v712, 0
      %v727 = vsel %vm338, %v713, 0
      %729 = vmatprep.subr.mxu0 0.0
      %730 = vmatpush1.msra.mxu0 %v715
      %731 = vmatprep.subr.mxu0 0.0
      %732 = vmatpush1.msra.mxu0 %v716
      %733 = vmatprep.subr.mxu0 0.0
      %734 = vmatpush1.msra.mxu0 %v717
      %735 = vmatprep.subr.mxu0 0.0
      %736 = vmatpush1.msra.mxu0 %v718
      %737 = vmatprep.subr.mxu0 0.0
      %738 = vmatpush1.msra.mxu0 %v719
      %739 = vmatprep.subr.mxu0 0.0
      %740 = vmatpush1.msra.mxu0 %v720
      %741 = vmatprep.subr.mxu0 0.0
      %742 = vmatpush1.msra.mxu0 %v721
      %743 = vmatprep.subr.mxu0 0.0
      %744 = vmatpush1.msra.mxu0 %v722
      %745 = vmatprep.subr.mxu0 0.0
      %746 = vmatpush1.msra.mxu0 0.0
      %747 = vmatprep.subr.mxu0 0.0
      %748 = vmatpush1.msra.mxu0 0.0
      %749 = vmatprep.subr.mxu0 0.0
      %750 = vmatpush1.msra.mxu0 0.0
      %751 = vmatprep.subr.mxu0 0.0
      %752 = vmatpush1.msra.mxu0 0.0
      %753 = vmatprep.subr.mxu0 0.0
      %754 = vmatpush1.msra.mxu0 0.0
      %755 = vmatprep.subr.mxu0 0.0
      %756 = vmatpush1.msra.mxu0 0.0
      %757 = vmatprep.subr.mxu0 0.0
      %758 = vmatpush1.msra.mxu0 0.0
      %759 = vmatprep.subr.mxu0 0.0
      %760 = vmatpush1.msra.mxu0 0.0
      %761 = vmatprep.subr.mxu0 0.0
      %762 = vmatpush1.msra.mxu0 0.0
      %763 = vmatprep.subr.mxu0 0.0
      %764 = vmatpush1.msra.mxu0 0.0
      %765 = vmatprep.subr.mxu0 0.0
      %766 = vmatpush1.msra.mxu0 0.0
      %767 = vmatprep.subr.mxu0 0.0
      %768 = vmatpush1.msra.mxu0 0.0
      %769 = vmatprep.subr.mxu0 0.0
      %770 = vmatpush1.msra.mxu0 0.0
      %771 = vmatprep.subr.mxu0 0.0
      %772 = vmatpush1.msra.mxu0 0.0
      %773 = vmatprep.subr.mxu0 0.0
      %774 = vmatpush1.msra.mxu0 0.0
      %775 = vmatprep.subr.mxu0 0.0
      %776 = vmatpush1.msra.mxu0 0.0
      %777 = vmatprep.subr.mxu0 0.0
      %778 = vmatpush1.msra.mxu0 0.0
      %779 = vmatprep.subr.mxu0 0.0
      %780 = vmatpush1.msra.mxu0 0.0
      %781 = vmatprep.subr.mxu0 0.0
      %782 = vmatpush1.msra.mxu0 0.0
      %783 = vmatprep.subr.mxu0 0.0
      %784 = vmatpush1.msra.mxu0 0.0
      %785 = vmatprep.subr.mxu0 0.0
      %786 = vmatpush1.msra.mxu0 0.0
      %787 = vmatprep.subr.mxu0 0.0
      %788 = vmatpush1.msra.mxu0 0.0
      %789 = vmatprep.subr.mxu0 0.0
      %790 = vmatpush1.msra.mxu0 0.0
      %791 = vmatprep.subr.mxu0 0.0
      %792 = vmatpush1.msra.mxu0 0.0
      %793 = vmatprep.mubr.f32.mxu0 0.0
      %794 = vmatmul.mubr.f32.gmra.mrb[0].mxu0 %v724
      %v795 = vpop.f32.mrb[0].mxu0
      %v796 = vadd.f32 0.0, %v795
      %v797 = vpop.f32.mrb[0].mxu0
      %798 = vmatprep.mubr.f32.mxu0 0.0
      %799 = vmatmul.mubr.f32.gmra.mrb[0].mxu0 %v727
      %v800 = vpop.f32.mrb[0].mxu0
      %v801 = vadd.f32 0.0, %v800
      %v802 = vpop.f32.mrb[0].mxu0
      %803 = vdwg.mxu0
      %v804 = vadd.f32 %v710, %v796
      %v805 = vadd.f32 %v711, %v801
      %v806 = vld [vmem:[#allocation2 + $0x5] sm:$0xff]
      %v807 = vld [vmem:[#allocation2 + $0xd] sm:$0xff]
      %s808 = scalar_lea.vmem %s1, 320
      %v809 = vld [vmem:[%s808] sm:$0xff]
      %v810 = vld [vmem:[%s808 + $0x8] sm:$0xff]
      %v811 = vld [vmem:[%s808 + $0x10] sm:$0xff]
      %v812 = vld [vmem:[%s808 + $0x18] sm:$0xff]
      %v813 = vld [vmem:[%s808 + $0x20] sm:$0xff]
      %v814 = vld [vmem:[%s808 + $0x28] sm:$0xff]
      %v815 = vld [vmem:[%s808 + $0x30] sm:$0xff]
      %v816 = vld [vmem:[%s808 + $0x38] sm:$0xff]
      %v818 = vsel %vm338, %v806, 0
      %v821 = vsel %vm338, %v807, 0
      %823 = vmatprep.subr.mxu0 0.0
      %824 = vmatpush1.msra.mxu0 %v809
      %825 = vmatprep.subr.mxu0 0.0
      %826 = vmatpush1.msra.mxu0 %v810
      %827 = vmatprep.subr.mxu0 0.0
      %828 = vmatpush1.msra.mxu0 %v811
      %829 = vmatprep.subr.mxu0 0.0
      %830 = vmatpush1.msra.mxu0 %v812
      %831 = vmatprep.subr.mxu0 0.0
      %832 = vmatpush1.msra.mxu0 %v813
      %833 = vmatprep.subr.mxu0 0.0
      %834 = vmatpush1.msra.mxu0 %v814
      %835 = vmatprep.subr.mxu0 0.0
      %836 = vmatpush1.msra.mxu0 %v815
      %837 = vmatprep.subr.mxu0 0.0
      %838 = vmatpush1.msra.mxu0 %v816
      %839 = vmatprep.subr.mxu0 0.0
      %840 = vmatpush1.msra.mxu0 0.0
      %841 = vmatprep.subr.mxu0 0.0
      %842 = vmatpush1.msra.mxu0 0.0
      %843 = vmatprep.subr.mxu0 0.0
      %844 = vmatpush1.msra.mxu0 0.0
      %845 = vmatprep.subr.mxu0 0.0
      %846 = vmatpush1.msra.mxu0 0.0
      %847 = vmatprep.subr.mxu0 0.0
      %848 = vmatpush1.msra.mxu0 0.0
      %849 = vmatprep.subr.mxu0 0.0
      %850 = vmatpush1.msra.mxu0 0.0
      %851 = vmatprep.subr.mxu0 0.0
      %852 = vmatpush1.msra.mxu0 0.0
      %853 = vmatprep.subr.mxu0 0.0
      %854 = vmatpush1.msra.mxu0 0.0
      %855 = vmatprep.subr.mxu0 0.0
      %856 = vmatpush1.msra.mxu0 0.0
      %857 = vmatprep.subr.mxu0 0.0
      %858 = vmatpush1.msra.mxu0 0.0
      %859 = vmatprep.subr.mxu0 0.0
      %860 = vmatpush1.msra.mxu0 0.0
      %861 = vmatprep.subr.mxu0 0.0
      %862 = vmatpush1.msra.mxu0 0.0
      %863 = vmatprep.subr.mxu0 0.0
      %864 = vmatpush1.msra.mxu0 0.0
      %865 = vmatprep.subr.mxu0 0.0
      %866 = vmatpush1.msra.mxu0 0.0
      %867 = vmatprep.subr.mxu0 0.0
      %868 = vmatpush1.msra.mxu0 0.0
      %869 = vmatprep.subr.mxu0 0.0
      %870 = vmatpush1.msra.mxu0 0.0
      %871 = vmatprep.subr.mxu0 0.0
      %872 = vmatpush1.msra.mxu0 0.0
      %873 = vmatprep.subr.mxu0 0.0
      %874 = vmatpush1.msra.mxu0 0.0
      %875 = vmatprep.subr.mxu0 0.0
      %876 = vmatpush1.msra.mxu0 0.0
      %877 = vmatprep.subr.mxu0 0.0
      %878 = vmatpush1.msra.mxu0 0.0
      %879 = vmatprep.subr.mxu0 0.0
      %880 = vmatpush1.msra.mxu0 0.0
      %881 = vmatprep.subr.mxu0 0.0
      %882 = vmatpush1.msra.mxu0 0.0
      %883 = vmatprep.subr.mxu0 0.0
      %884 = vmatpush1.msra.mxu0 0.0
      %885 = vmatprep.subr.mxu0 0.0
      %886 = vmatpush1.msra.mxu0 0.0
      %887 = vmatprep.mubr.f32.mxu0 0.0
      %888 = vmatmul.mubr.f32.gmra.mrb[0].mxu0 %v818
      %v889 = vpop.f32.mrb[0].mxu0
      %v890 = vadd.f32 0.0, %v889
      %v891 = vpop.f32.mrb[0].mxu0
      %892 = vmatprep.mubr.f32.mxu0 0.0
      %893 = vmatmul.mubr.f32.gmra.mrb[0].mxu0 %v821
      %v894 = vpop.f32.mrb[0].mxu0
      %v895 = vadd.f32 0.0, %v894
      %v896 = vpop.f32.mrb[0].mxu0
      %897 = vdwg.mxu0
      %v898 = vadd.f32 %v804, %v890
      %v899 = vadd.f32 %v805, %v895
      %v900 = vld [vmem:[#allocation2 + $0x6] sm:$0xff]
      %v901 = vld [vmem:[#allocation2 + $0xe] sm:$0xff]
      %s902 = scalar_lea.vmem %s1, 384
      %v903 = vld [vmem:[%s902] sm:$0xff]
      %v904 = vld [vmem:[%s902 + $0x8] sm:$0xff]
      %v905 = vld [vmem:[%s902 + $0x10] sm:$0xff]
      %v906 = vld [vmem:[%s902 + $0x18] sm:$0xff]
      %v907 = vld [vmem:[%s902 + $0x20] sm:$0xff]
      %v908 = vld [vmem:[%s902 + $0x28] sm:$0xff]
      %v909 = vld [vmem:[%s902 + $0x30] sm:$0xff]
      %v910 = vld [vmem:[%s902 + $0x38] sm:$0xff]
      %v912 = vsel %vm338, %v900, 0
      %v915 = vsel %vm338, %v901, 0
      %917 = vmatprep.subr.mxu0 0.0
      %918 = vmatpush1.msra.mxu0 %v903
      %919 = vmatprep.subr.mxu0 0.0
      %920 = vmatpush1.msra.mxu0 %v904
      %921 = vmatprep.subr.mxu0 0.0
      %922 = vmatpush1.msra.mxu0 %v905
      %923 = vmatprep.subr.mxu0 0.0
      %924 = vmatpush1.msra.mxu0 %v906
      %925 = vmatprep.subr.mxu0 0.0
      %926 = vmatpush1.msra.mxu0 %v907
      %927 = vmatprep.subr.mxu0 0.0
      %928 = vmatpush1.msra.mxu0 %v908
      %929 = vmatprep.subr.mxu0 0.0
      %930 = vmatpush1.msra.mxu0 %v909
      %931 = vmatprep.subr.mxu0 0.0
      %932 = vmatpush1.msra.mxu0 %v910
      %933 = vmatprep.subr.mxu0 0.0
      %934 = vmatpush1.msra.mxu0 0.0
      %935 = vmatprep.subr.mxu0 0.0
      %936 = vmatpush1.msra.mxu0 0.0
      %937 = vmatprep.subr.mxu0 0.0
      %938 = vmatpush1.msra.mxu0 0.0
      %939 = vmatprep.subr.mxu0 0.0
      %940 = vmatpush1.msra.mxu0 0.0
      %941 = vmatprep.subr.mxu0 0.0
      %942 = vmatpush1.msra.mxu0 0.0
      %943 = vmatprep.subr.mxu0 0.0
      %944 = vmatpush1.msra.mxu0 0.0
      %945 = vmatprep.subr.mxu0 0.0
      %946 = vmatpush1.msra.mxu0 0.0
      %947 = vmatprep.subr.mxu0 0.0
      %948 = vmatpush1.msra.mxu0 0.0
      %949 = vmatprep.subr.mxu0 0.0
      %950 = vmatpush1.msra.mxu0 0.0
      %951 = vmatprep.subr.mxu0 0.0
      %952 = vmatpush1.msra.mxu0 0.0
      %953 = vmatprep.subr.mxu0 0.0
      %954 = vmatpush1.msra.mxu0 0.0
      %955 = vmatprep.subr.mxu0 0.0
      %956 = vmatpush1.msra.mxu0 0.0
      %957 = vmatprep.subr.mxu0 0.0
      %958 = vmatpush1.msra.mxu0 0.0
      %959 = vmatprep.subr.mxu0 0.0
      %960 = vmatpush1.msra.mxu0 0.0
      %961 = vmatprep.subr.mxu0 0.0
      %962 = vmatpush1.msra.mxu0 0.0
      %963 = vmatprep.subr.mxu0 0.0
      %964 = vmatpush1.msra.mxu0 0.0
      %965 = vmatprep.subr.mxu0 0.0
      %966 = vmatpush1.msra.mxu0 0.0
      %967 = vmatprep.subr.mxu0 0.0
      %968 = vmatpush1.msra.mxu0 0.0
      %969 = vmatprep.subr.mxu0 0.0
      %970 = vmatpush1.msra.mxu0 0.0
      %971 = vmatprep.subr.mxu0 0.0
      %972 = vmatpush1.msra.mxu0 0.0
      %973 = vmatprep.subr.mxu0 0.0
      %974 = vmatpush1.msra.mxu0 0.0
      %975 = vmatprep.subr.mxu0 0.0
      %976 = vmatpush1.msra.mxu0 0.0
      %977 = vmatprep.subr.mxu0 0.0
      %978 = vmatpush1.msra.mxu0 0.0
      %979 = vmatprep.subr.mxu0 0.0
      %980 = vmatpush1.msra.mxu0 0.0
      %981 = vmatprep.mubr.f32.mxu0 0.0
      %982 = vmatmul.mubr.f32.gmra.mrb[0].mxu0 %v912
      %v983 = vpop.f32.mrb[0].mxu0
      %v984 = vadd.f32 0.0, %v983
      %v985 = vpop.f32.mrb[0].mxu0
      %986 = vmatprep.mubr.f32.mxu0 0.0
      %987 = vmatmul.mubr.f32.gmra.mrb[0].mxu0 %v915
      %v988 = vpop.f32.mrb[0].mxu0
      %v989 = vadd.f32 0.0, %v988
      %v990 = vpop.f32.mrb[0].mxu0
      %991 = vdwg.mxu0
      %v992 = vadd.f32 %v898, %v984
      %v993 = vadd.f32 %v899, %v989
      %v994 = vld [vmem:[%s5] sm:$0x1]
      %v996 = vlaneseq
      %v997 = vshrl.u32 %v996, 7
      %v998 = vsub.s32 0, %v997
      %v999 = vrot.slane %v994, %v998
      %v1001 = vadd.f32 %v992, %v999
      %v1002 = vadd.f32 %v993, %v999
      %v1003 = vmax.f32 %v1001, 0.0
      %v1004 = vmax.f32 %v1002, 0.0
      %1005 = vst [vmem:[#allocation3] sm:$0x3] 0.0
      %1006 = vst [vmem:[#allocation3 + $0x12] sm:$0x3] 0.0
      %1007 = vst [vmem:[#allocation3 + $0x2] sm:$0xff] %v1003
      %1008 = vst [vmem:[#allocation3 + $0xa] sm:$0xff] %v1004
      %v1009 = vld [vmem:[#allocation3] sm:$0xff]
      %v1010 = vld [vmem:[#allocation3 + $0x8] sm:$0xff]
      %v1011 = vld [vmem:[%s2] sm:$0xff]
      %v1012 = vld [vmem:[%s2 + $0x8] sm:$0xff]
      %v1013 = vld [vmem:[%s2 + $0x10] sm:$0xff]
      %v1014 = vld [vmem:[%s2 + $0x18] sm:$0xff]
      %v1015 = vld [vmem:[%s2 + $0x20] sm:$0xff]
      %v1016 = vld [vmem:[%s2 + $0x28] sm:$0xff]
      %v1017 = vld [vmem:[%s2 + $0x30] sm:$0xff]
      %v1018 = vld [vmem:[%s2 + $0x38] sm:$0xff]
      %v1019 = vld [vmem:[%s2 + $0x40] sm:$0xff]
      %v1020 = vld [vmem:[%s2 + $0x48] sm:$0xff]
      %v1021 = vld [vmem:[%s2 + $0x50] sm:$0xff]
      %v1022 = vld [vmem:[%s2 + $0x58] sm:$0xff]
      %v1023 = vld [vmem:[%s2 + $0x60] sm:$0xff]
      %v1024 = vld [vmem:[%s2 + $0x68] sm:$0xff]
      %v1025 = vld [vmem:[%s2 + $0x70] sm:$0xff]
      %v1026 = vld [vmem:[%s2 + $0x78] sm:$0xff]
      %v1027 = vld [vmem:[#allocation3 + $0x1] sm:$0xff]
      %v1028 = vld [vmem:[#allocation3 + $0x9] sm:$0xff]
      %s1029 = scalar_lea.vmem %s2, 128
      %v1030 = vld [vmem:[%s1029] sm:$0xff]
      %v1031 = vld [vmem:[%s1029 + $0x8] sm:$0xff]
      %v1032 = vld [vmem:[%s1029 + $0x10] sm:$0xff]
      %v1033 = vld [vmem:[%s1029 + $0x18] sm:$0xff]
      %v1034 = vld [vmem:[%s1029 + $0x20] sm:$0xff]
      %v1035 = vld [vmem:[%s1029 + $0x28] sm:$0xff]
      %v1036 = vld [vmem:[%s1029 + $0x30] sm:$0xff]
      %v1037 = vld [vmem:[%s1029 + $0x38] sm:$0xff]
      %v1038 = vld [vmem:[%s1029 + $0x40] sm:$0xff]
      %v1039 = vld [vmem:[%s1029 + $0x48] sm:$0xff]
      %v1040 = vld [vmem:[%s1029 + $0x50] sm:$0xff]
      %v1041 = vld [vmem:[%s1029 + $0x58] sm:$0xff]
      %v1042 = vld [vmem:[%s1029 + $0x60] sm:$0xff]
      %v1043 = vld [vmem:[%s1029 + $0x68] sm:$0xff]
      %v1044 = vld [vmem:[%s1029 + $0x70] sm:$0xff]
      %v1045 = vld [vmem:[%s1029 + $0x78] sm:$0xff]
      %1046 = vmatprep.subr.mxu0 0.0
      %1047 = vmatpush1.msra.mxu0 %v1030
      %1048 = vmatprep.subr.mxu0 0.0
      %1049 = vmatpush1.msra.mxu0 %v1031
      %1050 = vmatprep.subr.mxu0 0.0
      %1051 = vmatpush1.msra.mxu0 %v1032
      %1052 = vmatprep.subr.mxu0 0.0
      %1053 = vmatpush1.msra.mxu0 %v1033
      %1054 = vmatprep.subr.mxu0 0.0
      %1055 = vmatpush1.msra.mxu0 %v1034
      %1056 = vmatprep.subr.mxu0 0.0
      %1057 = vmatpush1.msra.mxu0 %v1035
      %1058 = vmatprep.subr.mxu0 0.0
      %1059 = vmatpush1.msra.mxu0 %v1036
      %1060 = vmatprep.subr.mxu0 0.0
      %1061 = vmatpush1.msra.mxu0 %v1037
      %1062 = vmatprep.subr.mxu0 0.0
      %1063 = vmatpush1.msra.mxu0 %v1038
      %1064 = vmatprep.subr.mxu0 0.0
      %1065 = vmatpush1.msra.mxu0 %v1039
      %1066 = vmatprep.subr.mxu0 0.0
      %1067 = vmatpush1.msra.mxu0 %v1040
      %1068 = vmatprep.subr.mxu0 0.0
      %1069 = vmatpush1.msra.mxu0 %v1041
      %1070 = vmatprep.subr.mxu0 0.0
      %1071 = vmatpush1.msra.mxu0 %v1042
      %1072 = vmatprep.subr.mxu0 0.0
      %1073 = vmatpush1.msra.mxu0 %v1043
      %1074 = vmatprep.subr.mxu0 0.0
      %1075 = vmatpush1.msra.mxu0 %v1044
      %1076 = vmatprep.subr.mxu0 0.0
      %1077 = vmatpush1.msra.mxu0 %v1045
      %1078 = vmatprep.subr.mxu0 0.0
      %1079 = vmatpush1.msra.mxu0 0.0
      %1080 = vmatprep.subr.mxu0 0.0
      %1081 = vmatpush1.msra.mxu0 0.0
      %1082 = vmatprep.subr.mxu0 0.0
      %1083 = vmatpush1.msra.mxu0 0.0
      %1084 = vmatprep.subr.mxu0 0.0
      %1085 = vmatpush1.msra.mxu0 0.0
      %1086 = vmatprep.subr.mxu0 0.0
      %1087 = vmatpush1.msra.mxu0 0.0
      %1088 = vmatprep.subr.mxu0 0.0
      %1089 = vmatpush1.msra.mxu0 0.0
      %1090 = vmatprep.subr.mxu0 0.0
      %1091 = vmatpush1.msra.mxu0 0.0
      %1092 = vmatprep.subr.mxu0 0.0
      %1093 = vmatpush1.msra.mxu0 0.0
      %1094 = vmatprep.subr.mxu0 0.0
      %1095 = vmatpush1.msra.mxu0 0.0
      %1096 = vmatprep.subr.mxu0 0.0
      %1097 = vmatpush1.msra.mxu0 0.0
      %1098 = vmatprep.subr.mxu0 0.0
      %1099 = vmatpush1.msra.mxu0 0.0
      %1100 = vmatprep.subr.mxu0 0.0
      %1101 = vmatpush1.msra.mxu0 0.0
      %1102 = vmatprep.subr.mxu0 0.0
      %1103 = vmatpush1.msra.mxu0 0.0
      %1104 = vmatprep.subr.mxu0 0.0
      %1105 = vmatpush1.msra.mxu0 0.0
      %1106 = vmatprep.subr.mxu0 0.0
      %1107 = vmatpush1.msra.mxu0 0.0
      %1108 = vmatprep.subr.mxu0 0.0
      %1109 = vmatpush1.msra.mxu0 0.0
      %1110 = vmatprep.mubr.f32.mxu0 0.0
      %1111 = vmatmul.mubr.f32.gmra.mrb[0].mxu0 %v1027
      %v1112 = vpop.f32.mrb[0].mxu0
      %v1113 = vadd.f32 0.0, %v1112
      %v1114 = vpop.f32.mrb[0].mxu0
      %1115 = vmatprep.mubr.f32.mxu0 0.0
      %1116 = vmatmul.mubr.f32.gmra.mrb[0].mxu0 %v1028
      %v1117 = vpop.f32.mrb[0].mxu0
      %v1118 = vadd.f32 0.0, %v1117
      %v1119 = vpop.f32.mrb[0].mxu0
      %1120 = vdwg.mxu0
      %1121 = vmatprep.subr.mxu0 0.0
      %1122 = vmatpush1.msra.mxu0 %v1011
      %1123 = vmatprep.subr.mxu0 0.0
      %1124 = vmatpush1.msra.mxu0 %v1012
      %1125 = vmatprep.subr.mxu0 0.0
      %1126 = vmatpush1.msra.mxu0 %v1013
      %1127 = vmatprep.subr.mxu0 0.0
      %1128 = vmatpush1.msra.mxu0 %v1014
      %1129 = vmatprep.subr.mxu0 0.0
      %1130 = vmatpush1.msra.mxu0 %v1015
      %1131 = vmatprep.subr.mxu0 0.0
      %1132 = vmatpush1.msra.mxu0 %v1016
      %1133 = vmatprep.subr.mxu0 0.0
      %1134 = vmatpush1.msra.mxu0 %v1017
      %1135 = vmatprep.subr.mxu0 0.0
      %1136 = vmatpush1.msra.mxu0 %v1018
      %1137 = vmatprep.subr.mxu0 0.0
      %1138 = vmatpush1.msra.mxu0 %v1019
      %1139 = vmatprep.subr.mxu0 0.0
      %1140 = vmatpush1.msra.mxu0 %v1020
      %1141 = vmatprep.subr.mxu0 0.0
      %1142 = vmatpush1.msra.mxu0 %v1021
      %1143 = vmatprep.subr.mxu0 0.0
      %1144 = vmatpush1.msra.mxu0 %v1022
      %1145 = vmatprep.subr.mxu0 0.0
      %1146 = vmatpush1.msra.mxu0 %v1023
      %1147 = vmatprep.subr.mxu0 0.0
      %1148 = vmatpush1.msra.mxu0 %v1024
      %1149 = vmatprep.subr.mxu0 0.0
      %1150 = vmatpush1.msra.mxu0 %v1025
      %1151 = vmatprep.subr.mxu0 0.0
      %1152 = vmatpush1.msra.mxu0 %v1026
      %1153 = vmatprep.subr.mxu0 0.0
      %1154 = vmatpush1.msra.mxu0 0.0
      %1155 = vmatprep.subr.mxu0 0.0
      %1156 = vmatpush1.msra.mxu0 0.0
      %1157 = vmatprep.subr.mxu0 0.0
      %1158 = vmatpush1.msra.mxu0 0.0
      %1159 = vmatprep.subr.mxu0 0.0
      %1160 = vmatpush1.msra.mxu0 0.0
      %1161 = vmatprep.subr.mxu0 0.0
      %1162 = vmatpush1.msra.mxu0 0.0
      %1163 = vmatprep.subr.mxu0 0.0
      %1164 = vmatpush1.msra.mxu0 0.0
      %1165 = vmatprep.subr.mxu0 0.0
      %1166 = vmatpush1.msra.mxu0 0.0
      %1167 = vmatprep.subr.mxu0 0.0
      %1168 = vmatpush1.msra.mxu0 0.0
      %1169 = vmatprep.subr.mxu0 0.0
      %1170 = vmatpush1.msra.mxu0 0.0
      %1171 = vmatprep.subr.mxu0 0.0
      %1172 = vmatpush1.msra.mxu0 0.0
      %1173 = vmatprep.subr.mxu0 0.0
      %1174 = vmatpush1.msra.mxu0 0.0
      %1175 = vmatprep.subr.mxu0 0.0
      %1176 = vmatpush1.msra.mxu0 0.0
      %1177 = vmatprep.subr.mxu0 0.0
      %1178 = vmatpush1.msra.mxu0 0.0
      %1179 = vmatprep.subr.mxu0 0.0
      %1180 = vmatpush1.msra.mxu0 0.0
      %1181 = vmatprep.subr.mxu0 0.0
      %1182 = vmatpush1.msra.mxu0 0.0
      %1183 = vmatprep.subr.mxu0 0.0
      %1184 = vmatpush1.msra.mxu0 0.0
      %1185 = vmatprep.mubr.f32.mxu0 0.0
      %1186 = vmatmul.mubr.f32.gmra.mrb[0].mxu0 %v1009
      %v1187 = vpop.f32.mrb[0].mxu0
      %v1188 = vadd.f32 %v1113, %v1187
      %v1189 = vpop.f32.mrb[0].mxu0
      %1190 = vmatprep.mubr.f32.mxu0 0.0
      %1191 = vmatmul.mubr.f32.gmra.mrb[0].mxu0 %v1010
      %v1192 = vpop.f32.mrb[0].mxu0
      %v1193 = vadd.f32 %v1118, %v1192
      %v1194 = vpop.f32.mrb[0].mxu0
      %1195 = vdwg.mxu0
      %v1196 = vld [vmem:[#allocation3 + $0x2] sm:$0xff]
      %v1197 = vld [vmem:[#allocation3 + $0xa] sm:$0xff]
      %s1198 = scalar_lea.vmem %s2, 256
      %v1199 = vld [vmem:[%s1198] sm:$0xff]
      %v1200 = vld [vmem:[%s1198 + $0x8] sm:$0xff]
      %v1201 = vld [vmem:[%s1198 + $0x10] sm:$0xff]
      %v1202 = vld [vmem:[%s1198 + $0x18] sm:$0xff]
      %v1203 = vld [vmem:[%s1198 + $0x20] sm:$0xff]
      %v1204 = vld [vmem:[%s1198 + $0x28] sm:$0xff]
      %v1205 = vld [vmem:[%s1198 + $0x30] sm:$0xff]
      %v1206 = vld [vmem:[%s1198 + $0x38] sm:$0xff]
      %v1207 = vld [vmem:[%s1198 + $0x40] sm:$0xff]
      %v1208 = vld [vmem:[%s1198 + $0x48] sm:$0xff]
      %v1209 = vld [vmem:[%s1198 + $0x50] sm:$0xff]
      %v1210 = vld [vmem:[%s1198 + $0x58] sm:$0xff]
      %v1211 = vld [vmem:[%s1198 + $0x60] sm:$0xff]
      %v1212 = vld [vmem:[%s1198 + $0x68] sm:$0xff]
      %v1213 = vld [vmem:[%s1198 + $0x70] sm:$0xff]
      %v1214 = vld [vmem:[%s1198 + $0x78] sm:$0xff]
      %1215 = vmatprep.subr.mxu0 0.0
      %1216 = vmatpush1.msra.mxu0 %v1199
      %1217 = vmatprep.subr.mxu0 0.0
      %1218 = vmatpush1.msra.mxu0 %v1200
      %1219 = vmatprep.subr.mxu0 0.0
      %1220 = vmatpush1.msra.mxu0 %v1201
      %1221 = vmatprep.subr.mxu0 0.0
      %1222 = vmatpush1.msra.mxu0 %v1202
      %1223 = vmatprep.subr.mxu0 0.0
      %1224 = vmatpush1.msra.mxu0 %v1203
      %1225 = vmatprep.subr.mxu0 0.0
      %1226 = vmatpush1.msra.mxu0 %v1204
      %1227 = vmatprep.subr.mxu0 0.0
      %1228 = vmatpush1.msra.mxu0 %v1205
      %1229 = vmatprep.subr.mxu0 0.0
      %1230 = vmatpush1.msra.mxu0 %v1206
      %1231 = vmatprep.subr.mxu0 0.0
      %1232 = vmatpush1.msra.mxu0 %v1207
      %1233 = vmatprep.subr.mxu0 0.0
      %1234 = vmatpush1.msra.mxu0 %v1208
      %1235 = vmatprep.subr.mxu0 0.0
      %1236 = vmatpush1.msra.mxu0 %v1209
      %1237 = vmatprep.subr.mxu0 0.0
      %1238 = vmatpush1.msra.mxu0 %v1210
      %1239 = vmatprep.subr.mxu0 0.0
      %1240 = vmatpush1.msra.mxu0 %v1211
      %1241 = vmatprep.subr.mxu0 0.0
      %1242 = vmatpush1.msra.mxu0 %v1212
      %1243 = vmatprep.subr.mxu0 0.0
      %1244 = vmatpush1.msra.mxu0 %v1213
      %1245 = vmatprep.subr.mxu0 0.0
      %1246 = vmatpush1.msra.mxu0 %v1214
      %1247 = vmatprep.subr.mxu0 0.0
      %1248 = vmatpush1.msra.mxu0 0.0
      %1249 = vmatprep.subr.mxu0 0.0
      %1250 = vmatpush1.msra.mxu0 0.0
      %1251 = vmatprep.subr.mxu0 0.0
      %1252 = vmatpush1.msra.mxu0 0.0
      %1253 = vmatprep.subr.mxu0 0.0
      %1254 = vmatpush1.msra.mxu0 0.0
      %1255 = vmatprep.subr.mxu0 0.0
      %1256 = vmatpush1.msra.mxu0 0.0
      %1257 = vmatprep.subr.mxu0 0.0
      %1258 = vmatpush1.msra.mxu0 0.0
      %1259 = vmatprep.subr.mxu0 0.0
      %1260 = vmatpush1.msra.mxu0 0.0
      %1261 = vmatprep.subr.mxu0 0.0
      %1262 = vmatpush1.msra.mxu0 0.0
      %1263 = vmatprep.subr.mxu0 0.0
      %1264 = vmatpush1.msra.mxu0 0.0
      %1265 = vmatprep.subr.mxu0 0.0
      %1266 = vmatpush1.msra.mxu0 0.0
      %1267 = vmatprep.subr.mxu0 0.0
      %1268 = vmatpush1.msra.mxu0 0.0
      %1269 = vmatprep.subr.mxu0 0.0
      %1270 = vmatpush1.msra.mxu0 0.0
      %1271 = vmatprep.subr.mxu0 0.0
      %1272 = vmatpush1.msra.mxu0 0.0
      %1273 = vmatprep.subr.mxu0 0.0
      %1274 = vmatpush1.msra.mxu0 0.0
      %1275 = vmatprep.subr.mxu0 0.0
      %1276 = vmatpush1.msra.mxu0 0.0
      %1277 = vmatprep.subr.mxu0 0.0
      %1278 = vmatpush1.msra.mxu0 0.0
      %1279 = vmatprep.mubr.f32.mxu0 0.0
      %1280 = vmatmul.mubr.f32.gmra.mrb[0].mxu0 %v1196
      %v1281 = vpop.f32.mrb[0].mxu0
      %v1282 = vadd.f32 0.0, %v1281
      %v1283 = vpop.f32.mrb[0].mxu0
      %1284 = vmatprep.mubr.f32.mxu0 0.0
      %1285 = vmatmul.mubr.f32.gmra.mrb[0].mxu0 %v1197
      %v1286 = vpop.f32.mrb[0].mxu0
      %v1287 = vadd.f32 0.0, %v1286
      %v1288 = vpop.f32.mrb[0].mxu0
      %1289 = vdwg.mxu0
      %v1290 = vadd.f32 %v1188, %v1282
      %v1291 = vadd.f32 %v1193, %v1287
      %v1292 = vld [vmem:[#allocation3 + $0x3] sm:$0xff]
      %v1293 = vld [vmem:[#allocation3 + $0xb] sm:$0xff]
      %s1294 = scalar_lea.vmem %s2, 384
      %v1295 = vld [vmem:[%s1294] sm:$0xff]
      %v1296 = vld [vmem:[%s1294 + $0x8] sm:$0xff]
      %v1297 = vld [vmem:[%s1294 + $0x10] sm:$0xff]
      %v1298 = vld [vmem:[%s1294 + $0x18] sm:$0xff]
      %v1299 = vld [vmem:[%s1294 + $0x20] sm:$0xff]
      %v1300 = vld [vmem:[%s1294 + $0x28] sm:$0xff]
      %v1301 = vld [vmem:[%s1294 + $0x30] sm:$0xff]
      %v1302 = vld [vmem:[%s1294 + $0x38] sm:$0xff]
      %v1303 = vld [vmem:[%s1294 + $0x40] sm:$0xff]
      %v1304 = vld [vmem:[%s1294 + $0x48] sm:$0xff]
      %v1305 = vld [vmem:[%s1294 + $0x50] sm:$0xff]
      %v1306 = vld [vmem:[%s1294 + $0x58] sm:$0xff]
      %v1307 = vld [vmem:[%s1294 + $0x60] sm:$0xff]
      %v1308 = vld [vmem:[%s1294 + $0x68] sm:$0xff]
      %v1309 = vld [vmem:[%s1294 + $0x70] sm:$0xff]
      %v1310 = vld [vmem:[%s1294 + $0x78] sm:$0xff]
      %1311 = vmatprep.subr.mxu0 0.0
      %1312 = vmatpush1.msra.mxu0 %v1295
      %1313 = vmatprep.subr.mxu0 0.0
      %1314 = vmatpush1.msra.mxu0 %v1296
      %1315 = vmatprep.subr.mxu0 0.0
      %1316 = vmatpush1.msra.mxu0 %v1297
      %1317 = vmatprep.subr.mxu0 0.0
      %1318 = vmatpush1.msra.mxu0 %v1298
      %1319 = vmatprep.subr.mxu0 0.0
      %1320 = vmatpush1.msra.mxu0 %v1299
      %1321 = vmatprep.subr.mxu0 0.0
      %1322 = vmatpush1.msra.mxu0 %v1300
      %1323 = vmatprep.subr.mxu0 0.0
      %1324 = vmatpush1.msra.mxu0 %v1301
      %1325 = vmatprep.subr.mxu0 0.0
      %1326 = vmatpush1.msra.mxu0 %v1302
      %1327 = vmatprep.subr.mxu0 0.0
      %1328 = vmatpush1.msra.mxu0 %v1303
      %1329 = vmatprep.subr.mxu0 0.0
      %1330 = vmatpush1.msra.mxu0 %v1304
      %1331 = vmatprep.subr.mxu0 0.0
      %1332 = vmatpush1.msra.mxu0 %v1305
      %1333 = vmatprep.subr.mxu0 0.0
      %1334 = vmatpush1.msra.mxu0 %v1306
      %1335 = vmatprep.subr.mxu0 0.0
      %1336 = vmatpush1.msra.mxu0 %v1307
      %1337 = vmatprep.subr.mxu0 0.0
      %1338 = vmatpush1.msra.mxu0 %v1308
      %1339 = vmatprep.subr.mxu0 0.0
      %1340 = vmatpush1.msra.mxu0 %v1309
      %1341 = vmatprep.subr.mxu0 0.0
      %1342 = vmatpush1.msra.mxu0 %v1310
      %1343 = vmatprep.subr.mxu0 0.0
      %1344 = vmatpush1.msra.mxu0 0.0
      %1345 = vmatprep.subr.mxu0 0.0
      %1346 = vmatpush1.msra.mxu0 0.0
      %1347 = vmatprep.subr.mxu0 0.0
      %1348 = vmatpush1.msra.mxu0 0.0
      %1349 = vmatprep.subr.mxu0 0.0
      %1350 = vmatpush1.msra.mxu0 0.0
      %1351 = vmatprep.subr.mxu0 0.0
      %1352 = vmatpush1.msra.mxu0 0.0
      %1353 = vmatprep.subr.mxu0 0.0
      %1354 = vmatpush1.msra.mxu0 0.0
      %1355 = vmatprep.subr.mxu0 0.0
      %1356 = vmatpush1.msra.mxu0 0.0
      %1357 = vmatprep.subr.mxu0 0.0
      %1358 = vmatpush1.msra.mxu0 0.0
      %1359 = vmatprep.subr.mxu0 0.0
      %1360 = vmatpush1.msra.mxu0 0.0
      %1361 = vmatprep.subr.mxu0 0.0
      %1362 = vmatpush1.msra.mxu0 0.0
      %1363 = vmatprep.subr.mxu0 0.0
      %1364 = vmatpush1.msra.mxu0 0.0
      %1365 = vmatprep.subr.mxu0 0.0
      %1366 = vmatpush1.msra.mxu0 0.0
      %1367 = vmatprep.subr.mxu0 0.0
      %1368 = vmatpush1.msra.mxu0 0.0
      %1369 = vmatprep.subr.mxu0 0.0
      %1370 = vmatpush1.msra.mxu0 0.0
      %1371 = vmatprep.subr.mxu0 0.0
      %1372 = vmatpush1.msra.mxu0 0.0
      %1373 = vmatprep.subr.mxu0 0.0
      %1374 = vmatpush1.msra.mxu0 0.0
      %1375 = vmatprep.mubr.f32.mxu0 0.0
      %1376 = vmatmul.mubr.f32.gmra.mrb[0].mxu0 %v1292
      %v1377 = vpop.f32.mrb[0].mxu0
      %v1378 = vadd.f32 0.0, %v1377
      %v1379 = vpop.f32.mrb[0].mxu0
      %1380 = vmatprep.mubr.f32.mxu0 0.0
      %1381 = vmatmul.mubr.f32.gmra.mrb[0].mxu0 %v1293
      %v1382 = vpop.f32.mrb[0].mxu0
      %v1383 = vadd.f32 0.0, %v1382
      %v1384 = vpop.f32.mrb[0].mxu0
      %1385 = vdwg.mxu0
      %v1386 = vadd.f32 %v1290, %v1378
      %v1387 = vadd.f32 %v1291, %v1383
      %v1388 = vld [vmem:[#allocation3 + $0x4] sm:$0xff]
      %v1389 = vld [vmem:[#allocation3 + $0xc] sm:$0xff]
      %s1390 = scalar_lea.vmem %s2, 512
      %v1391 = vld [vmem:[%s1390] sm:$0xff]
      %v1392 = vld [vmem:[%s1390 + $0x8] sm:$0xff]
      %v1393 = vld [vmem:[%s1390 + $0x10] sm:$0xff]
      %v1394 = vld [vmem:[%s1390 + $0x18] sm:$0xff]
      %v1395 = vld [vmem:[%s1390 + $0x20] sm:$0xff]
      %v1396 = vld [vmem:[%s1390 + $0x28] sm:$0xff]
      %v1397 = vld [vmem:[%s1390 + $0x30] sm:$0xff]
      %v1398 = vld [vmem:[%s1390 + $0x38] sm:$0xff]
      %v1399 = vld [vmem:[%s1390 + $0x40] sm:$0xff]
      %v1400 = vld [vmem:[%s1390 + $0x48] sm:$0xff]
      %v1401 = vld [vmem:[%s1390 + $0x50] sm:$0xff]
      %v1402 = vld [vmem:[%s1390 + $0x58] sm:$0xff]
      %v1403 = vld [vmem:[%s1390 + $0x60] sm:$0xff]
      %v1404 = vld [vmem:[%s1390 + $0x68] sm:$0xff]
      %v1405 = vld [vmem:[%s1390 + $0x70] sm:$0xff]
      %v1406 = vld [vmem:[%s1390 + $0x78] sm:$0xff]
      %1407 = vmatprep.subr.mxu0 0.0
      %1408 = vmatpush1.msra.mxu0 %v1391
      %1409 = vmatprep.subr.mxu0 0.0
      %1410 = vmatpush1.msra.mxu0 %v1392
      %1411 = vmatprep.subr.mxu0 0.0
      %1412 = vmatpush1.msra.mxu0 %v1393
      %1413 = vmatprep.subr.mxu0 0.0
      %1414 = vmatpush1.msra.mxu0 %v1394
      %1415 = vmatprep.subr.mxu0 0.0
      %1416 = vmatpush1.msra.mxu0 %v1395
      %1417 = vmatprep.subr.mxu0 0.0
      %1418 = vmatpush1.msra.mxu0 %v1396
      %1419 = vmatprep.subr.mxu0 0.0
      %1420 = vmatpush1.msra.mxu0 %v1397
      %1421 = vmatprep.subr.mxu0 0.0
      %1422 = vmatpush1.msra.mxu0 %v1398
      %1423 = vmatprep.subr.mxu0 0.0
      %1424 = vmatpush1.msra.mxu0 %v1399
      %1425 = vmatprep.subr.mxu0 0.0
      %1426 = vmatpush1.msra.mxu0 %v1400
      %1427 = vmatprep.subr.mxu0 0.0
      %1428 = vmatpush1.msra.mxu0 %v1401
      %1429 = vmatprep.subr.mxu0 0.0
      %1430 = vmatpush1.msra.mxu0 %v1402
      %1431 = vmatprep.subr.mxu0 0.0
      %1432 = vmatpush1.msra.mxu0 %v1403
      %1433 = vmatprep.subr.mxu0 0.0
      %1434 = vmatpush1.msra.mxu0 %v1404
      %1435 = vmatprep.subr.mxu0 0.0
      %1436 = vmatpush1.msra.mxu0 %v1405
      %1437 = vmatprep.subr.mxu0 0.0
      %1438 = vmatpush1.msra.mxu0 %v1406
      %1439 = vmatprep.subr.mxu0 0.0
      %1440 = vmatpush1.msra.mxu0 0.0
      %1441 = vmatprep.subr.mxu0 0.0
      %1442 = vmatpush1.msra.mxu0 0.0
      %1443 = vmatprep.subr.mxu0 0.0
      %1444 = vmatpush1.msra.mxu0 0.0
      %1445 = vmatprep.subr.mxu0 0.0
      %1446 = vmatpush1.msra.mxu0 0.0
      %1447 = vmatprep.subr.mxu0 0.0
      %1448 = vmatpush1.msra.mxu0 0.0
      %1449 = vmatprep.subr.mxu0 0.0
      %1450 = vmatpush1.msra.mxu0 0.0
      %1451 = vmatprep.subr.mxu0 0.0
      %1452 = vmatpush1.msra.mxu0 0.0
      %1453 = vmatprep.subr.mxu0 0.0
      %1454 = vmatpush1.msra.mxu0 0.0
      %1455 = vmatprep.subr.mxu0 0.0
      %1456 = vmatpush1.msra.mxu0 0.0
      %1457 = vmatprep.subr.mxu0 0.0
      %1458 = vmatpush1.msra.mxu0 0.0
      %1459 = vmatprep.subr.mxu0 0.0
      %1460 = vmatpush1.msra.mxu0 0.0
      %1461 = vmatprep.subr.mxu0 0.0
      %1462 = vmatpush1.msra.mxu0 0.0
      %1463 = vmatprep.subr.mxu0 0.0
      %1464 = vmatpush1.msra.mxu0 0.0
      %1465 = vmatprep.subr.mxu0 0.0
      %1466 = vmatpush1.msra.mxu0 0.0
      %1467 = vmatprep.subr.mxu0 0.0
      %1468 = vmatpush1.msra.mxu0 0.0
      %1469 = vmatprep.subr.mxu0 0.0
      %1470 = vmatpush1.msra.mxu0 0.0
      %1471 = vmatprep.mubr.f32.mxu0 0.0
      %1472 = vmatmul.mubr.f32.gmra.mrb[0].mxu0 %v1388
      %v1473 = vpop.f32.mrb[0].mxu0
      %v1474 = vadd.f32 0.0, %v1473
      %v1475 = vpop.f32.mrb[0].mxu0
      %1476 = vmatprep.mubr.f32.mxu0 0.0
      %1477 = vmatmul.mubr.f32.gmra.mrb[0].mxu0 %v1389
      %v1478 = vpop.f32.mrb[0].mxu0
      %v1479 = vadd.f32 0.0, %v1478
      %v1480 = vpop.f32.mrb[0].mxu0
      %1481 = vdwg.mxu0
      %v1482 = vadd.f32 %v1386, %v1474
      %v1483 = vadd.f32 %v1387, %v1479
      %v1484 = vld [vmem:[%s6] sm:$0x1]
      %v1486 = vlaneseq
      %v1487 = vshrl.u32 %v1486, 7
      %v1488 = vsub.s32 0, %v1487
      %v1489 = vrot.slane %v1484, %v1488
      %v1491 = vadd.f32 %v1482, %v1489
      %v1492 = vadd.f32 %v1483, %v1489
      %v1493 = vmax.f32 %v1491, 0.0
      %v1494 = vmax.f32 %v1492, 0.0
      %1495 = vst [vmem:[#allocation4] sm:$0x1] 0.0
      %1496 = vst [vmem:[#allocation4 + $0x11] sm:$0x1] 0.0
      %1497 = vst [vmem:[#allocation4 + $0x1] sm:$0xff] %v1493
      %1498 = vst [vmem:[#allocation4 + $0x9] sm:$0xff] %v1494
      %v1499 = vld [vmem:[#allocation4] sm:$0xff]
      %v1500 = vld [vmem:[#allocation4 + $0x8] sm:$0xff]
      %v1501 = vld [vmem:[%s3] sm:$0xff]
      %v1502 = vld [vmem:[%s3 + $0x8] sm:$0xff]
      %v1503 = vld [vmem:[%s3 + $0x10] sm:$0xff]
      %v1504 = vld [vmem:[%s3 + $0x18] sm:$0xff]
      %v1505 = vld [vmem:[%s3 + $0x20] sm:$0xff]
      %v1506 = vld [vmem:[%s3 + $0x28] sm:$0xff]
      %v1507 = vld [vmem:[%s3 + $0x30] sm:$0xff]
      %v1508 = vld [vmem:[%s3 + $0x38] sm:$0xff]
      %v1509 = vld [vmem:[%s3 + $0x40] sm:$0xff]
      %v1510 = vld [vmem:[%s3 + $0x48] sm:$0xff]
      %v1511 = vld [vmem:[%s3 + $0x50] sm:$0xff]
      %v1512 = vld [vmem:[%s3 + $0x58] sm:$0xff]
      %v1513 = vld [vmem:[%s3 + $0x60] sm:$0xff]
      %v1514 = vld [vmem:[%s3 + $0x68] sm:$0xff]
      %v1515 = vld [vmem:[%s3 + $0x70] sm:$0xff]
      %v1516 = vld [vmem:[%s3 + $0x78] sm:$0xff]
      %v1517 = vld [vmem:[#allocation4 + $0x1] sm:$0xff]
      %v1518 = vld [vmem:[#allocation4 + $0x9] sm:$0xff]
      %s1519 = scalar_lea.vmem %s3, 128
      %v1520 = vld [vmem:[%s1519] sm:$0xff]
      %v1521 = vld [vmem:[%s1519 + $0x8] sm:$0xff]
      %v1522 = vld [vmem:[%s1519 + $0x10] sm:$0xff]
      %v1523 = vld [vmem:[%s1519 + $0x18] sm:$0xff]
      %v1524 = vld [vmem:[%s1519 + $0x20] sm:$0xff]
      %v1525 = vld [vmem:[%s1519 + $0x28] sm:$0xff]
      %v1526 = vld [vmem:[%s1519 + $0x30] sm:$0xff]
      %v1527 = vld [vmem:[%s1519 + $0x38] sm:$0xff]
      %v1528 = vld [vmem:[%s1519 + $0x40] sm:$0xff]
      %v1529 = vld [vmem:[%s1519 + $0x48] sm:$0xff]
      %v1530 = vld [vmem:[%s1519 + $0x50] sm:$0xff]
      %v1531 = vld [vmem:[%s1519 + $0x58] sm:$0xff]
      %v1532 = vld [vmem:[%s1519 + $0x60] sm:$0xff]
      %v1533 = vld [vmem:[%s1519 + $0x68] sm:$0xff]
      %v1534 = vld [vmem:[%s1519 + $0x70] sm:$0xff]
      %v1535 = vld [vmem:[%s1519 + $0x78] sm:$0xff]
      %1536 = vmatprep.subr.mxu0 0.0
      %1537 = vmatpush1.msra.mxu0 %v1520
      %1538 = vmatprep.subr.mxu0 0.0
      %1539 = vmatpush1.msra.mxu0 %v1521
      %1540 = vmatprep.subr.mxu0 0.0
      %1541 = vmatpush1.msra.mxu0 %v1522
      %1542 = vmatprep.subr.mxu0 0.0
      %1543 = vmatpush1.msra.mxu0 %v1523
      %1544 = vmatprep.subr.mxu0 0.0
      %1545 = vmatpush1.msra.mxu0 %v1524
      %1546 = vmatprep.subr.mxu0 0.0
      %1547 = vmatpush1.msra.mxu0 %v1525
      %1548 = vmatprep.subr.mxu0 0.0
      %1549 = vmatpush1.msra.mxu0 %v1526
      %1550 = vmatprep.subr.mxu0 0.0
      %1551 = vmatpush1.msra.mxu0 %v1527
      %1552 = vmatprep.subr.mxu0 0.0
      %1553 = vmatpush1.msra.mxu0 %v1528
      %1554 = vmatprep.subr.mxu0 0.0
      %1555 = vmatpush1.msra.mxu0 %v1529
      %1556 = vmatprep.subr.mxu0 0.0
      %1557 = vmatpush1.msra.mxu0 %v1530
      %1558 = vmatprep.subr.mxu0 0.0
      %1559 = vmatpush1.msra.mxu0 %v1531
      %1560 = vmatprep.subr.mxu0 0.0
      %1561 = vmatpush1.msra.mxu0 %v1532
      %1562 = vmatprep.subr.mxu0 0.0
      %1563 = vmatpush1.msra.mxu0 %v1533
      %1564 = vmatprep.subr.mxu0 0.0
      %1565 = vmatpush1.msra.mxu0 %v1534
      %1566 = vmatprep.subr.mxu0 0.0
      %1567 = vmatpush1.msra.mxu0 %v1535
      %1568 = vmatprep.subr.mxu0 0.0
      %1569 = vmatpush1.msra.mxu0 0.0
      %1570 = vmatprep.subr.mxu0 0.0
      %1571 = vmatpush1.msra.mxu0 0.0
      %1572 = vmatprep.subr.mxu0 0.0
      %1573 = vmatpush1.msra.mxu0 0.0
      %1574 = vmatprep.subr.mxu0 0.0
      %1575 = vmatpush1.msra.mxu0 0.0
      %1576 = vmatprep.subr.mxu0 0.0
      %1577 = vmatpush1.msra.mxu0 0.0
      %1578 = vmatprep.subr.mxu0 0.0
      %1579 = vmatpush1.msra.mxu0 0.0
      %1580 = vmatprep.subr.mxu0 0.0
      %1581 = vmatpush1.msra.mxu0 0.0
      %1582 = vmatprep.subr.mxu0 0.0
      %1583 = vmatpush1.msra.mxu0 0.0
      %1584 = vmatprep.subr.mxu0 0.0
      %1585 = vmatpush1.msra.mxu0 0.0
      %1586 = vmatprep.subr.mxu0 0.0
      %1587 = vmatpush1.msra.mxu0 0.0
      %1588 = vmatprep.subr.mxu0 0.0
      %1589 = vmatpush1.msra.mxu0 0.0
      %1590 = vmatprep.subr.mxu0 0.0
      %1591 = vmatpush1.msra.mxu0 0.0
      %1592 = vmatprep.subr.mxu0 0.0
      %1593 = vmatpush1.msra.mxu0 0.0
      %1594 = vmatprep.subr.mxu0 0.0
      %1595 = vmatpush1.msra.mxu0 0.0
      %1596 = vmatprep.subr.mxu0 0.0
      %1597 = vmatpush1.msra.mxu0 0.0
      %1598 = vmatprep.subr.mxu0 0.0
      %1599 = vmatpush1.msra.mxu0 0.0
      %1600 = vmatprep.mubr.f32.mxu0 0.0
      %1601 = vmatmul.mubr.f32.gmra.mrb[0].mxu0 %v1517
      %v1602 = vpop.f32.mrb[0].mxu0
      %v1603 = vadd.f32 0.0, %v1602
      %v1604 = vpop.f32.mrb[0].mxu0
      %1605 = vmatprep.mubr.f32.mxu0 0.0
      %1606 = vmatmul.mubr.f32.gmra.mrb[0].mxu0 %v1518
      %v1607 = vpop.f32.mrb[0].mxu0
      %v1608 = vadd.f32 0.0, %v1607
      %v1609 = vpop.f32.mrb[0].mxu0
      %1610 = vdwg.mxu0
      %1611 = vmatprep.subr.mxu0 0.0
      %1612 = vmatpush1.msra.mxu0 %v1501
      %1613 = vmatprep.subr.mxu0 0.0
      %1614 = vmatpush1.msra.mxu0 %v1502
      %1615 = vmatprep.subr.mxu0 0.0
      %1616 = vmatpush1.msra.mxu0 %v1503
      %1617 = vmatprep.subr.mxu0 0.0
      %1618 = vmatpush1.msra.mxu0 %v1504
      %1619 = vmatprep.subr.mxu0 0.0
      %1620 = vmatpush1.msra.mxu0 %v1505
      %1621 = vmatprep.subr.mxu0 0.0
      %1622 = vmatpush1.msra.mxu0 %v1506
      %1623 = vmatprep.subr.mxu0 0.0
      %1624 = vmatpush1.msra.mxu0 %v1507
      %1625 = vmatprep.subr.mxu0 0.0
      %1626 = vmatpush1.msra.mxu0 %v1508
      %1627 = vmatprep.subr.mxu0 0.0
      %1628 = vmatpush1.msra.mxu0 %v1509
      %1629 = vmatprep.subr.mxu0 0.0
      %1630 = vmatpush1.msra.mxu0 %v1510
      %1631 = vmatprep.subr.mxu0 0.0
      %1632 = vmatpush1.msra.mxu0 %v1511
      %1633 = vmatprep.subr.mxu0 0.0
      %1634 = vmatpush1.msra.mxu0 %v1512
      %1635 = vmatprep.subr.mxu0 0.0
      %1636 = vmatpush1.msra.mxu0 %v1513
      %1637 = vmatprep.subr.mxu0 0.0
      %1638 = vmatpush1.msra.mxu0 %v1514
      %1639 = vmatprep.subr.mxu0 0.0
      %1640 = vmatpush1.msra.mxu0 %v1515
      %1641 = vmatprep.subr.mxu0 0.0
      %1642 = vmatpush1.msra.mxu0 %v1516
      %1643 = vmatprep.subr.mxu0 0.0
      %1644 = vmatpush1.msra.mxu0 0.0
      %1645 = vmatprep.subr.mxu0 0.0
      %1646 = vmatpush1.msra.mxu0 0.0
      %1647 = vmatprep.subr.mxu0 0.0
      %1648 = vmatpush1.msra.mxu0 0.0
      %1649 = vmatprep.subr.mxu0 0.0
      %1650 = vmatpush1.msra.mxu0 0.0
      %1651 = vmatprep.subr.mxu0 0.0
      %1652 = vmatpush1.msra.mxu0 0.0
      %1653 = vmatprep.subr.mxu0 0.0
      %1654 = vmatpush1.msra.mxu0 0.0
      %1655 = vmatprep.subr.mxu0 0.0
      %1656 = vmatpush1.msra.mxu0 0.0
      %1657 = vmatprep.subr.mxu0 0.0
      %1658 = vmatpush1.msra.mxu0 0.0
      %1659 = vmatprep.subr.mxu0 0.0
      %1660 = vmatpush1.msra.mxu0 0.0
      %1661 = vmatprep.subr.mxu0 0.0
      %1662 = vmatpush1.msra.mxu0 0.0
      %1663 = vmatprep.subr.mxu0 0.0
      %1664 = vmatpush1.msra.mxu0 0.0
      %1665 = vmatprep.subr.mxu0 0.0
      %1666 = vmatpush1.msra.mxu0 0.0
      %1667 = vmatprep.subr.mxu0 0.0
      %1668 = vmatpush1.msra.mxu0 0.0
      %1669 = vmatprep.subr.mxu0 0.0
      %1670 = vmatpush1.msra.mxu0 0.0
      %1671 = vmatprep.subr.mxu0 0.0
      %1672 = vmatpush1.msra.mxu0 0.0
      %1673 = vmatprep.subr.mxu0 0.0
      %1674 = vmatpush1.msra.mxu0 0.0
      %1675 = vmatprep.mubr.f32.mxu0 0.0
      %1676 = vmatmul.mubr.f32.gmra.mrb[0].mxu0 %v1499
      %v1677 = vpop.f32.mrb[0].mxu0
      %v1678 = vadd.f32 %v1603, %v1677
      %v1679 = vpop.f32.mrb[0].mxu0
      %1680 = vmatprep.mubr.f32.mxu0 0.0
      %1681 = vmatmul.mubr.f32.gmra.mrb[0].mxu0 %v1500
      %v1682 = vpop.f32.mrb[0].mxu0
      %v1683 = vadd.f32 %v1608, %v1682
      %v1684 = vpop.f32.mrb[0].mxu0
      %1685 = vdwg.mxu0
      %v1686 = vld [vmem:[#allocation4 + $0x2] sm:$0xff]
      %v1687 = vld [vmem:[#allocation4 + $0xa] sm:$0xff]
      %s1688 = scalar_lea.vmem %s3, 256
      %v1689 = vld [vmem:[%s1688] sm:$0xff]
      %v1690 = vld [vmem:[%s1688 + $0x8] sm:$0xff]
      %v1691 = vld [vmem:[%s1688 + $0x10] sm:$0xff]
      %v1692 = vld [vmem:[%s1688 + $0x18] sm:$0xff]
      %v1693 = vld [vmem:[%s1688 + $0x20] sm:$0xff]
      %v1694 = vld [vmem:[%s1688 + $0x28] sm:$0xff]
      %v1695 = vld [vmem:[%s1688 + $0x30] sm:$0xff]
      %v1696 = vld [vmem:[%s1688 + $0x38] sm:$0xff]
      %v1697 = vld [vmem:[%s1688 + $0x40] sm:$0xff]
      %v1698 = vld [vmem:[%s1688 + $0x48] sm:$0xff]
      %v1699 = vld [vmem:[%s1688 + $0x50] sm:$0xff]
      %v1700 = vld [vmem:[%s1688 + $0x58] sm:$0xff]
      %v1701 = vld [vmem:[%s1688 + $0x60] sm:$0xff]
      %v1702 = vld [vmem:[%s1688 + $0x68] sm:$0xff]
      %v1703 = vld [vmem:[%s1688 + $0x70] sm:$0xff]
      %v1704 = vld [vmem:[%s1688 + $0x78] sm:$0xff]
      %1705 = vmatprep.subr.mxu0 0.0
      %1706 = vmatpush1.msra.mxu0 %v1689
      %1707 = vmatprep.subr.mxu0 0.0
      %1708 = vmatpush1.msra.mxu0 %v1690
      %1709 = vmatprep.subr.mxu0 0.0
      %1710 = vmatpush1.msra.mxu0 %v1691
      %1711 = vmatprep.subr.mxu0 0.0
      %1712 = vmatpush1.msra.mxu0 %v1692
      %1713 = vmatprep.subr.mxu0 0.0
      %1714 = vmatpush1.msra.mxu0 %v1693
      %1715 = vmatprep.subr.mxu0 0.0
      %1716 = vmatpush1.msra.mxu0 %v1694
      %1717 = vmatprep.subr.mxu0 0.0
      %1718 = vmatpush1.msra.mxu0 %v1695
      %1719 = vmatprep.subr.mxu0 0.0
      %1720 = vmatpush1.msra.mxu0 %v1696
      %1721 = vmatprep.subr.mxu0 0.0
      %1722 = vmatpush1.msra.mxu0 %v1697
      %1723 = vmatprep.subr.mxu0 0.0
      %1724 = vmatpush1.msra.mxu0 %v1698
      %1725 = vmatprep.subr.mxu0 0.0
      %1726 = vmatpush1.msra.mxu0 %v1699
      %1727 = vmatprep.subr.mxu0 0.0
      %1728 = vmatpush1.msra.mxu0 %v1700
      %1729 = vmatprep.subr.mxu0 0.0
      %1730 = vmatpush1.msra.mxu0 %v1701
      %1731 = vmatprep.subr.mxu0 0.0
      %1732 = vmatpush1.msra.mxu0 %v1702
      %1733 = vmatprep.subr.mxu0 0.0
      %1734 = vmatpush1.msra.mxu0 %v1703
      %1735 = vmatprep.subr.mxu0 0.0
      %1736 = vmatpush1.msra.mxu0 %v1704
      %1737 = vmatprep.subr.mxu0 0.0
      %1738 = vmatpush1.msra.mxu0 0.0
      %1739 = vmatprep.subr.mxu0 0.0
      %1740 = vmatpush1.msra.mxu0 0.0
      %1741 = vmatprep.subr.mxu0 0.0
      %1742 = vmatpush1.msra.mxu0 0.0
      %1743 = vmatprep.subr.mxu0 0.0
      %1744 = vmatpush1.msra.mxu0 0.0
      %1745 = vmatprep.subr.mxu0 0.0
      %1746 = vmatpush1.msra.mxu0 0.0
      %1747 = vmatprep.subr.mxu0 0.0
      %1748 = vmatpush1.msra.mxu0 0.0
      %1749 = vmatprep.subr.mxu0 0.0
      %1750 = vmatpush1.msra.mxu0 0.0
      %1751 = vmatprep.subr.mxu0 0.0
      %1752 = vmatpush1.msra.mxu0 0.0
      %1753 = vmatprep.subr.mxu0 0.0
      %1754 = vmatpush1.msra.mxu0 0.0
      %1755 = vmatprep.subr.mxu0 0.0
      %1756 = vmatpush1.msra.mxu0 0.0
      %1757 = vmatprep.subr.mxu0 0.0
      %1758 = vmatpush1.msra.mxu0 0.0
      %1759 = vmatprep.subr.mxu0 0.0
      %1760 = vmatpush1.msra.mxu0 0.0
      %1761 = vmatprep.subr.mxu0 0.0
      %1762 = vmatpush1.msra.mxu0 0.0
      %1763 = vmatprep.subr.mxu0 0.0
      %1764 = vmatpush1.msra.mxu0 0.0
      %1765 = vmatprep.subr.mxu0 0.0
      %1766 = vmatpush1.msra.mxu0 0.0
      %1767 = vmatprep.subr.mxu0 0.0
      %1768 = vmatpush1.msra.mxu0 0.0
      %1769 = vmatprep.mubr.f32.mxu0 0.0
      %1770 = vmatmul.mubr.f32.gmra.mrb[0].mxu0 %v1686
      %v1771 = vpop.f32.mrb[0].mxu0
      %v1772 = vadd.f32 0.0, %v1771
      %v1773 = vpop.f32.mrb[0].mxu0
      %1774 = vmatprep.mubr.f32.mxu0 0.0
      %1775 = vmatmul.mubr.f32.gmra.mrb[0].mxu0 %v1687
      %v1776 = vpop.f32.mrb[0].mxu0
      %v1777 = vadd.f32 0.0, %v1776
      %v1778 = vpop.f32.mrb[0].mxu0
      %1779 = vdwg.mxu0
      %v1780 = vadd.f32 %v1678, %v1772
      %v1781 = vadd.f32 %v1683, %v1777
      %v1782 = vld [vmem:[%s7] sm:$0x1]
      %v1784 = vlaneseq
      %v1785 = vshrl.u32 %v1784, 7
      %v1786 = vsub.s32 0, %v1785
      %v1787 = vrot.slane %v1782, %v1786
      %v1789 = vadd.f32 %v1780, %v1787
      %v1790 = vadd.f32 %v1781, %v1787
      %v1791 = vld [vmem:[%s4] sm:$0xff]
      %v1792 = vld [vmem:[%s4 + $0x8] sm:$0xff]
      %v1793 = vld [vmem:[%s4 + $0x10] sm:$0xff]
      %v1794 = vld [vmem:[%s4 + $0x18] sm:$0xff]
      %v1795 = vld [vmem:[%s4 + $0x20] sm:$0xff]
      %v1796 = vld [vmem:[%s4 + $0x28] sm:$0xff]
      %v1797 = vld [vmem:[%s4 + $0x30] sm:$0xff]
      %v1798 = vld [vmem:[%s4 + $0x38] sm:$0xff]
      %v1799 = vld [vmem:[%s8] sm:$0x1]
      %v1801 = vlaneseq
      %v1802 = vshrl.u32 %v1801, 7
      %v1803 = vsub.s32 0, %v1802
      %v1804 = vrot.slane %v1799, %v1803
      %v1807 = vsel %vm338, %v333, 0
      %v1810 = vsel %vm338, %v334, 0
      %1812 = vmatprep.subr.mxu0 0.0
      %1813 = vmatpush1.msra.mxu0 %v1791
      %1814 = vmatprep.subr.mxu0 0.0
      %1815 = vmatpush1.msra.mxu0 %v1792
      %1816 = vmatprep.subr.mxu0 0.0
      %1817 = vmatpush1.msra.mxu0 %v1793
      %1818 = vmatprep.subr.mxu0 0.0
      %1819 = vmatpush1.msra.mxu0 %v1794
      %1820 = vmatprep.subr.mxu0 0.0
      %1821 = vmatpush1.msra.mxu0 %v1795
      %1822 = vmatprep.subr.mxu0 0.0
      %1823 = vmatpush1.msra.mxu0 %v1796
      %1824 = vmatprep.subr.mxu0 0.0
      %1825 = vmatpush1.msra.mxu0 %v1797
      %1826 = vmatprep.subr.mxu0 0.0
      %1827 = vmatpush1.msra.mxu0 %v1798
      %1828 = vmatprep.subr.mxu0 0.0
      %1829 = vmatpush1.msra.mxu0 0.0
      %1830 = vmatprep.subr.mxu0 0.0
      %1831 = vmatpush1.msra.mxu0 0.0
      %1832 = vmatprep.subr.mxu0 0.0
      %1833 = vmatpush1.msra.mxu0 0.0
      %1834 = vmatprep.subr.mxu0 0.0
      %1835 = vmatpush1.msra.mxu0 0.0
      %1836 = vmatprep.subr.mxu0 0.0
      %1837 = vmatpush1.msra.mxu0 0.0
      %1838 = vmatprep.subr.mxu0 0.0
      %1839 = vmatpush1.msra.mxu0 0.0
      %1840 = vmatprep.subr.mxu0 0.0
      %1841 = vmatpush1.msra.mxu0 0.0
      %1842 = vmatprep.subr.mxu0 0.0
      %1843 = vmatpush1.msra.mxu0 0.0
      %1844 = vmatprep.subr.mxu0 0.0
      %1845 = vmatpush1.msra.mxu0 0.0
      %1846 = vmatprep.subr.mxu0 0.0
      %1847 = vmatpush1.msra.mxu0 0.0
      %1848 = vmatprep.subr.mxu0 0.0
      %1849 = vmatpush1.msra.mxu0 0.0
      %1850 = vmatprep.subr.mxu0 0.0
      %1851 = vmatpush1.msra.mxu0 0.0
      %1852 = vmatprep.subr.mxu0 0.0
      %1853 = vmatpush1.msra.mxu0 0.0
      %1854 = vmatprep.subr.mxu0 0.0
      %1855 = vmatpush1.msra.mxu0 0.0
      %1856 = vmatprep.subr.mxu0 0.0
      %1857 = vmatpush1.msra.mxu0 0.0
      %1858 = vmatprep.subr.mxu0 0.0
      %1859 = vmatpush1.msra.mxu0 0.0
      %1860 = vmatprep.subr.mxu0 0.0
      %1861 = vmatpush1.msra.mxu0 0.0
      %1862 = vmatprep.subr.mxu0 0.0
      %1863 = vmatpush1.msra.mxu0 0.0
      %1864 = vmatprep.subr.mxu0 0.0
      %1865 = vmatpush1.msra.mxu0 0.0
      %1866 = vmatprep.subr.mxu0 0.0
      %1867 = vmatpush1.msra.mxu0 0.0
      %1868 = vmatprep.subr.mxu0 0.0
      %1869 = vmatpush1.msra.mxu0 0.0
      %1870 = vmatprep.subr.mxu0 0.0
      %1871 = vmatpush1.msra.mxu0 0.0
      %1872 = vmatprep.subr.mxu0 0.0
      %1873 = vmatpush1.msra.mxu0 0.0
      %1874 = vmatprep.subr.mxu0 0.0
      %1875 = vmatpush1.msra.mxu0 0.0
      %1876 = vmatprep.mubr.f32.mxu0 0.0
      %1877 = vmatmul.mubr.f32.gmra.mrb[0].mxu0 %v1807
      %v1878 = vpop.f32.mrb[0].mxu0
      %v1879 = vadd.f32 %v1804, %v1878
      %v1880 = vpop.f32.mrb[0].mxu0
      %1881 = vmatprep.mubr.f32.mxu0 0.0
      %1882 = vmatmul.mubr.f32.gmra.mrb[0].mxu0 %v1810
      %v1883 = vpop.f32.mrb[0].mxu0
      %v1884 = vadd.f32 %v1804, %v1883
      %v1885 = vpop.f32.mrb[0].mxu0
      %1886 = vdwg.mxu0
      %v1887 = vxor.u32 %v1879, 2147483648
      %v1888 = vxor.u32 %v1884, 2147483648
      %v1889 = vmul.f32 %v1887, 1.442695
      %v1890 = vpow.pop %v1889
      %v1891 = vmul.f32 %v1888, 1.442695
      %v1892 = vpow.pop %v1891
      %v1893 = vadd.f32 %v1890, 1.0
      %v1894 = vadd.f32 %v1892, 1.0
      %v1895 = vrcp.pop %v1893
      %v1896 = vmul.f32 1.0, %v1895
      %v1897 = vrcp.pop %v1894
      %v1898 = vmul.f32 1.0, %v1897
      %v1899 = vadd.f32 %v1789, %v1896
      %v1900 = vadd.f32 %v1790, %v1898
      %v1901 = vmax.f32 %v1899, 0.0
      %v1902 = vmax.f32 %v1900, 0.0
      %1903 = vst [vmem:[%s332] sm:$0xff] %v1901
      %1904 = vst [vmem:[%s332 + $0x8] sm:$0xff] %v1902
      %p1905 = scmp.lt.s32.totalorder %s20, 1
      %s1906 = scalar_select %p1905, %s20, 1
      %s1907 = smul.addr %s1906, 2
      %s1908 = smul.addr %s1907, 8
      %s1909 = scalar_lea.vmem %s9, %s1908
      // Predicated region
      $region57: #{msie_forward.1} parent=55 // pred_check
        %p1910 = pneg %p232
      $region58: #{msie_forward.1} parent=55 // pred_check_branch
        %1912 = sbr.rel (%p1910) target = $region60
      $region59: #{msie_forward.1} parent=55 // pred_region
        _
      $region60: #{msie_forward.1} parent=55 // pred_fallthru
        _
    $region56: #{msie_forward.1} parent=5 // pred_fallthru
      _
    %p1913 = scmp.le.s32.totalorder 2, %s15
    // Predicated region
    $region61: #{msie_forward.1} parent=5 // pred_check
      %p1914 = pneg %p1913
    $region62: #{msie_forward.1} parent=5 // pred_check_branch
      %1916 = sbr.rel (%p1914) target = $region64
    $region63: #{msie_forward.1} parent=5 // pred_region
      %s1917 = ssub.s32 %s15, 2
      // Predicated region
      $region65: #{msie_forward.1} parent=63 // pred_check
        %p1918 = pneg %p238
      $region66: #{msie_forward.1} parent=63 // pred_check_branch
        %1920 = sbr.rel (%p1918) target = $region68
      $region67: #{msie_forward.1} parent=63 // pred_region
        %p1921 = scmp.lt.s32.totalorder %s21, 1
        %s1922 = scalar_select %p1921, %s21, 1
        %s1923 = smul.addr %s1922, 2
        %s1924 = smul.addr %s1923, 8
        %s1925 = scalar_lea.vmem %s9, %s1924
      $region68: #{msie_forward.1} parent=63 // pred_fallthru
        _
    $region64: #{msie_forward.1} parent=5 // pred_fallthru
      _
  $region6: #{msie_forward.1} parent=0 // loop_footer
    %s19 = sadd.s32 1, %s15
  $region7: #{msie_forward.1} parent=0 // loop_footer_branch
    %14 = sbr.rel target = $region3
  $region8: #{msie_forward.1} parent=0 // loop_exit
    _

</llo_original>
